<compile_context>
chip_gen: v7x
topology: tpu7x:2x2x1
jax: 0.10.0
libtpu: 0.0.40
codegen_flags: <defaults>
</compile_context>

<pallas_src>
import functools

import jax
import jax.numpy as jnp
import numpy as np
from jax.experimental import pallas as pl
from jax.experimental.pallas import tpu as pltpu

BN_EPS = 1e-5
C_PAD = 128                      # lane-dense padded output-channel width
VMEM_LIMIT = 32 * 1024 * 1024    # scoped-VMEM budget; leaves headroom on v7x's 64 MiB/TC


def _conv_tile(x_ref, w_ref, *, K, P, TH, W):
    """3x3 conv for one (TH, W) row tile -> (TH*W, C_PAD) f32 accumulator."""
    Cin = x_ref.shape[-1]
    CP = w_ref.shape[-1]
    ih = pl.program_id(1)
    row0 = ih * TH
    if TH % 8 == 0:
        row0 = pl.multiple_of(row0, 8)
    # Padded rows [ih*TH, ih*TH + TH + 2P) carry the halo for output rows
    # [ih*TH, ih*TH + TH).
    xs = x_ref[0, pl.ds(row0, TH + 2 * P), :, :]          # (TH+2P, W+2P, Cin) bf16

    acc = jnp.zeros((TH * W, CP), jnp.float32)
    # K*K shallow (depth-Cin) MXU dots.  At Cin=4 this beats a 9-way im2col
    # lane concat.  TODO(synk): fold the taps into one deep contraction once
    # Cin >= ~32 (shape-dependent choice, not hard-coded forever).
    for kw in range(K):
        # Hoisted per-kw relayout: one slice+reshape, then the K kh-taps are
        # contiguous row windows (sublane-aligned whenever W % 8 == 0).
        col = xs[:, kw:kw + W, :].reshape((TH + 2 * P) * W, Cin)   # bf16
        for kh in range(K):
            a = col[kh * W:(kh + TH) * W, :]                       # (TH*W, Cin)
            acc += jnp.dot(a, w_ref[kh, kw], preferred_element_type=jnp.float32)
    return acc


def _conv_stats_kernel(x_ref, w_ref, sum_ref, sumsq_ref, *, K, P, TH, W):
    # Pass 1: conv stays on-chip; only streaming BN partials are written.
    acc = _conv_tile(x_ref, w_ref, K=K, P=P, TH=TH, W=W)           # (TH*W, CP) f32
    CP = acc.shape[-1]
    # var = E[x^2] - mean^2 is finalized outside; f32 here is adequate at these
    # activation scales (see correctness note: use a shifted/two-pass variance
    # if |mean| >> std in other settings).
    sum_ref[...] = jnp.sum(acc, axis=0).reshape(1, 1, 1, CP)
    sumsq_ref[...] = jnp.sum(acc * acc, axis=0).reshape(1, 1, 1, CP)


def _conv_bn_relu_kernel(x_ref, w_ref, scale_ref, shift_ref, o_ref, *, K, P, TH, W, Cout):
    # Pass 2: recompute conv tile, fuse BN affine + ReLU (f32 VPU — v5e has no
    # bf16 VPU path), store lane-dense (Cout, TH*W).
    acc = _conv_tile(x_ref, w_ref, K=K, P=P, TH=TH, W=W)           # (TH*W, CP) f32
    y = jnp.maximum(acc * scale_ref[...] + shift_ref[...], 0.0)
    # Full 128-lane transpose (both dims multiples of 128 -> native XLU tile
    # path), then slice to Cout.  A narrow (TH*W, Cout) transpose would save
    # XLU work but risks an unsupported Mosaic lowering; this stays a handful
    # of vreg tile transposes, off the MXU/DMA critical path.
    yt = jnp.transpose(y)[:Cout, :]                                # (Cout, TH*W)
    o_ref[...] = yt.reshape(1, Cout, TH * W).astype(o_ref.dtype)


def _pick_row_tile(H, W, max_tile_pixels=4096):
    """Largest divisor TH of H with lane-dense TH*W (multiple of 128), capped."""
    cands = [th for th in range(1, H + 1) if H % th == 0 and (th * W) % 128 == 0]
    if not cands:
        raise ValueError("H, W must admit a row tile with (TH*W) % 128 == 0")
    within = [th for th in cands if th * W <= max_tile_pixels]
    return max(within) if within else min(cands)


def conv_block(x_nchw, conv_weight, conv_bias, bn_gamma, bn_beta, p=1, row_tile=None):
    """Forward pass of ConvBlock.

    x_nchw:      (N, Cin, H, W)     -- PyTorch NCHW input
    conv_weight: (Cout, Cin, K, K)  -- PyTorch Conv2d weight layout
    conv_bias:   (Cout,)            -- accepted for API parity; cancels exactly
                                       under batch-statistics BatchNorm (train
                                       mode / track_running_stats=False).  Do
                                       NOT reuse for an eval running-stats
                                       variant where it would not cancel.
    bn_gamma, bn_beta: (Cout,)
    returns:     (N, Cout, H, W)    -- NCHW, matching PyTorch
    """
    del conv_bias  # exactly cancelled by the batch-mean subtraction in BN
    N, Cin, H, W = x_nchw.shape
    Cout, _, K, _ = conv_weight.shape
    CP = C_PAD
    TH = _pick_row_tile(H, W) if row_tile is None else row_tile

    assert Cout <= CP
    assert H % TH == 0, "row tile must divide H"
    assert (TH * W) % 128 == 0, "row tile * W must be a multiple of 128"
    nH = H // TH
    Hp, Wp = H + 2 * p, W + 2 * p

    # --- glue: bf16 cast + NCHW->NHWC + spatial halo padding (plain JAX) ---
    # TODO(synk): fold the transpose and halo padding into the kernel DMA
    # (edge-masked taps) to avoid the extra XLA passes over x for large inputs.
    x_nhwc = jnp.transpose(x_nchw.astype(jnp.bfloat16), (0, 2, 3, 1))
    x_pad = jnp.pad(x_nhwc, ((0, 0), (p, p), (p, p), (0, 0)))

    # Weights: OIHW -> HWIO, zero-pad Cout to 128 lanes, cast once to bf16.
    w_hwio = jnp.transpose(conv_weight, (2, 3, 1, 0))                  # (K, K, Cin, Cout)
    w_pad = jnp.pad(w_hwio, ((0, 0), (0, 0), (0, 0), (0, CP - Cout))).astype(jnp.bfloat16)

    cparams = pltpu.CompilerParams(
        dimension_semantics=("parallel", "parallel"),   # grid (N, nH): >= 2 steps for v7x
        vmem_limit_bytes=VMEM_LIMIT,
    )

    x_spec = pl.BlockSpec((1, Hp, Wp, Cin), lambda n, h: (n, 0, 0, 0))
    w_spec = pl.BlockSpec((K, K, Cin, CP), lambda n, h: (0, 0, 0, 0))
    # TODO(synk): for large H switch x_spec to halo row tiles (or manual DMA)
    # so the resident input footprint is O(TH), required on v7x's 64 MiB VMEM.

    # --- Pass 1: conv on-chip -> per-tile BN partials only (no conv in HBM) ---
    kern1 = functools.partial(_conv_stats_kernel, K=K, P=p, TH=TH, W=W)
    tile_sum, tile_sumsq = pl.pallas_call(
        kern1,
        grid=(N, nH),
        in_specs=[x_spec, w_spec],
        out_specs=[
            pl.BlockSpec((1, 1, 1, CP), lambda n, h: (n, h, 0, 0)),
            pl.BlockSpec((1, 1, 1, CP), lambda n, h: (n, h, 0, 0)),
        ],
        out_shape=[
            jax.ShapeDtypeStruct((N, nH, 1, CP), jnp.float32),
            jax.ShapeDtypeStruct((N, nH, 1, CP), jnp.float32),
        ],
        compiler_params=cparams,
    )(x_pad, w_pad)

    # --- tiny cross-tile combine (a (128,)-vector op) -> per-channel scale/shift ---
    count = jnp.float32(N * H * W)
    s = jnp.sum(tile_sum, axis=(0, 1, 2))
    ss = jnp.sum(tile_sumsq, axis=(0, 1, 2))
    mean = s / count
    var = jnp.maximum(ss / count - mean * mean, 0.0)        # biased variance, f32
    inv_std = jax.lax.rsqrt(var + BN_EPS)
    gamma_p = jnp.pad(bn_gamma.astype(jnp.float32), (0, CP - Cout))   # zeros neutralize pad lanes
    beta_p = jnp.pad(bn_beta.astype(jnp.float32), (0, CP - Cout))
    scale = (gamma_p * inv_std).reshape(1, CP)
    shift = (beta_p - mean * gamma_p * inv_std).reshape(1, CP)

    # --- Pass 2: recompute conv + fused affine-BN + ReLU, lane-dense NC(HW) out ---
    kern2 = functools.partial(_conv_bn_relu_kernel, K=K, P=p, TH=TH, W=W, Cout=Cout)
    out_flat = pl.pallas_call(
        kern2,
        grid=(N, nH),
        in_specs=[
            x_spec,
            w_spec,
            pl.BlockSpec((1, CP), lambda n, h: (0, 0)),
            pl.BlockSpec((1, CP), lambda n, h: (0, 0)),
        ],
        out_specs=pl.BlockSpec((1, Cout, TH * W), lambda n, h: (n, 0, h)),
        out_shape=jax.ShapeDtypeStruct((N, Cout, H * W), x_nchw.dtype),
        compiler_params=cparams,
    )(x_pad, w_pad, scale, shift)

    return out_flat.reshape(N, Cout, H, W)


def _reference(x_nchw, conv_weight, conv_bias, bn_gamma, bn_beta, p=1):
    """Pure-JAX reference mirroring PyTorch semantics (f32, with conv bias)."""
    y = jax.lax.conv_general_dilated(
        x_nchw, conv_weight,
        window_strides=(1, 1),
        padding=((p, p), (p, p)),
        dimension_numbers=("NCHW", "OIHW", "NCHW"),
    ) + conv_bias.reshape(1, -1, 1, 1)
    mean = jnp.mean(y, axis=(0, 2, 3), keepdims=True)
    var = jnp.mean((y - mean) ** 2, axis=(0, 2, 3), keepdims=True)
    y = (y - mean) * jax.lax.rsqrt(var + BN_EPS)
    y = y * bn_gamma.reshape(1, -1, 1, 1) + bn_beta.reshape(1, -1, 1, 1)
    return jnp.maximum(y, 0.0)


if __name__ == "__main__":
    # Small deterministic config: batch=2, in_channels=4, out_channels=8,
    # spatial=16x16, kernel k=3, padding p=1.
    N, Cin, Cout, H, W, K, P = 2, 4, 8, 16, 16, 3, 1

    key = jax.random.PRNGKey(0)
    kx, kw, kb, kg, kbeta = jax.random.split(key, 5)

    x = jax.random.normal(kx, (N, Cin, H, W), dtype=jnp.float32)
    fan_in = Cin * K * K
    bound = 1.0 / np.sqrt(fan_in)
    conv_weight = jax.random.uniform(
        kw, (Cout, Cin, K, K), minval=-bound, maxval=bound, dtype=jnp.float32
    )
    conv_bias = jax.random.uniform(
        kb, (Cout,), minval=-bound, maxval=bound, dtype=jnp.float32
    )
    bn_gamma = 1.0 + 0.1 * jax.random.normal(kg, (Cout,), dtype=jnp.float32)
    bn_beta = 0.1 * jax.random.normal(kbeta, (Cout,), dtype=jnp.float32)

    out = conv_block(x, conv_weight, conv_bias, bn_gamma, bn_beta, p=P)
    out = jax.block_until_ready(out)

    ref = _reference(x, conv_weight, conv_bias, bn_gamma, bn_beta, p=P)
    # bf16 MXU operands (f32 accumulation) vs. the f32 reference -> compare at
    # bf16-appropriate tolerance.
    np.testing.assert_allclose(np.asarray(out), np.asarray(ref), atol=2e-2, rtol=2e-2)

    print("KERNEL_OK")
</pallas_src>

<mosaic_0001>
module attributes {stable_mosaic.version = 11 : i64} {
  func.func @_conv_stats_kernel(%arg0: i32, %arg1: i32, %arg2: memref<1x18x18x4xbf16, #tpu.memory_space<vmem>>, %arg3: memref<3x3x4x128xbf16, #tpu.memory_space<vmem>>, %arg4: memref<1x1x1x128xf32, #tpu.memory_space<vmem>>, %arg5: memref<1x1x1x128xf32, #tpu.memory_space<vmem>>) attributes {dimension_semantics = [#tpu.dimension_semantics<parallel>, #tpu.dimension_semantics<parallel>], iteration_bounds = array<i64: 2, 1>, scalar_prefetch = 0 : i64, scratch_operands = 0 : i64, tpu.core_type = #tpu.core_type<tc>, window_params = [{transform_indices = @transform_0, window_bounds = array<i64: 1, 18, 18, 4>}, {pipeline_mode = #tpu.pipeline_mode<synchronous>, transform_indices = @transform_1, window_bounds = array<i64: 3, 3, 4, 128>}, {transform_indices = @transform_2, window_bounds = array<i64: 1, 1, 1, 128>}, {transform_indices = @transform_3, window_bounds = array<i64: 1, 1, 1, 128>}]} {
    %c16_i32 = arith.constant 16 : i32
    %0 = arith.muli %arg1, %c16_i32 : i32
    %1 = tpu.assume_multiple %0, 8 : i32
    %c0 = arith.constant 0 : index
    %2 = arith.index_cast %1 : i32 to index
    %c0_0 = arith.constant 0 : index
    %c0_1 = arith.constant 0 : index
    %3 = vector.load %arg2[%c0, %2, %c0_0, %c0_1] : memref<1x18x18x4xbf16, #tpu.memory_space<vmem>>, vector<1x18x18x4xbf16>
    %4 = vector.shape_cast %3 : vector<1x18x18x4xbf16> to vector<18x18x4xbf16>
    %cst = arith.constant 0.000000e+00 : f32
    %5 = vector.broadcast %cst : f32 to vector<256x128xf32>
    %6 = vector.extract_strided_slice %4 {offsets = [0, 0, 0], sizes = [18, 16, 4], strides = [1, 1, 1]} : vector<18x18x4xbf16> to vector<18x16x4xbf16>
    %7 = vector.shape_cast %6 : vector<18x16x4xbf16> to vector<288x4xbf16>
    %8 = vector.extract_strided_slice %7 {offsets = [0, 0], sizes = [256, 4], strides = [1, 1]} : vector<288x4xbf16> to vector<256x4xbf16>
    %c0_2 = arith.constant 0 : index
    %c0_3 = arith.constant 0 : index
    %c0_4 = arith.constant 0 : index
    %c0_5 = arith.constant 0 : index
    %9 = vector.load %arg3[%c0_2, %c0_3, %c0_4, %c0_5] : memref<3x3x4x128xbf16, #tpu.memory_space<vmem>>, vector<1x1x4x128xbf16>
    %10 = vector.shape_cast %9 : vector<1x1x4x128xbf16> to vector<4x128xbf16>
    %cst_6 = arith.constant dense<0.000000e+00> : vector<256x128xf32>
    %11 = tpu.matmul %8, %10, %cst_6 {dimension_numbers = #tpu.dot_dimension_numbers<[1], [0], [0], [1], [0, 0, 1, 1], [], []>} : vector<256x4xbf16>, vector<4x128xbf16>, vector<256x128xf32> -> vector<256x128xf32>
    %12 = arith.addf %5, %11 : vector<256x128xf32>
    %13 = vector.extract_strided_slice %7 {offsets = [16, 0], sizes = [256, 4], strides = [1, 1]} : vector<288x4xbf16> to vector<256x4xbf16>
    %c1 = arith.constant 1 : index
    %c0_7 = arith.constant 0 : index
    %c0_8 = arith.constant 0 : index
    %c0_9 = arith.constant 0 : index
    %14 = vector.load %arg3[%c1, %c0_7, %c0_8, %c0_9] : memref<3x3x4x128xbf16, #tpu.memory_space<vmem>>, vector<1x1x4x128xbf16>
    %15 = vector.shape_cast %14 : vector<1x1x4x128xbf16> to vector<4x128xbf16>
    %cst_10 = arith.constant dense<0.000000e+00> : vector<256x128xf32>
    %16 = tpu.matmul %13, %15, %cst_10 {dimension_numbers = #tpu.dot_dimension_numbers<[1], [0], [0], [1], [0, 0, 1, 1], [], []>} : vector<256x4xbf16>, vector<4x128xbf16>, vector<256x128xf32> -> vector<256x128xf32>
    %17 = arith.addf %12, %16 : vector<256x128xf32>
    %18 = vector.extract_strided_slice %7 {offsets = [32, 0], sizes = [256, 4], strides = [1, 1]} : vector<288x4xbf16> to vector<256x4xbf16>
    %c2 = arith.constant 2 : index
    %c0_11 = arith.constant 0 : index
    %c0_12 = arith.constant 0 : index
    %c0_13 = arith.constant 0 : index
    %19 = vector.load %arg3[%c2, %c0_11, %c0_12, %c0_13] : memref<3x3x4x128xbf16, #tpu.memory_space<vmem>>, vector<1x1x4x128xbf16>
    %20 = vector.shape_cast %19 : vector<1x1x4x128xbf16> to vector<4x128xbf16>
    %cst_14 = arith.constant dense<0.000000e+00> : vector<256x128xf32>
    %21 = tpu.matmul %18, %20, %cst_14 {dimension_numbers = #tpu.dot_dimension_numbers<[1], [0], [0], [1], [0, 0, 1, 1], [], []>} : vector<256x4xbf16>, vector<4x128xbf16>, vector<256x128xf32> -> vector<256x128xf32>
    %22 = arith.addf %17, %21 : vector<256x128xf32>
    %23 = vector.extract_strided_slice %4 {offsets = [0, 1, 0], sizes = [18, 16, 4], strides = [1, 1, 1]} : vector<18x18x4xbf16> to vector<18x16x4xbf16>
    %24 = vector.shape_cast %23 : vector<18x16x4xbf16> to vector<288x4xbf16>
    %25 = vector.extract_strided_slice %24 {offsets = [0, 0], sizes = [256, 4], strides = [1, 1]} : vector<288x4xbf16> to vector<256x4xbf16>
    %c0_15 = arith.constant 0 : index
    %c1_16 = arith.constant 1 : index
    %c0_17 = arith.constant 0 : index
    %c0_18 = arith.constant 0 : index
    %26 = vector.load %arg3[%c0_15, %c1_16, %c0_17, %c0_18] : memref<3x3x4x128xbf16, #tpu.memory_space<vmem>>, vector<1x1x4x128xbf16>
    %27 = vector.shape_cast %26 : vector<1x1x4x128xbf16> to vector<4x128xbf16>
    %cst_19 = arith.constant dense<0.000000e+00> : vector<256x128xf32>
    %28 = tpu.matmul %25, %27, %cst_19 {dimension_numbers = #tpu.dot_dimension_numbers<[1], [0], [0], [1], [0, 0, 1, 1], [], []>} : vector<256x4xbf16>, vector<4x128xbf16>, vector<256x128xf32> -> vector<256x128xf32>
    %29 = arith.addf %22, %28 : vector<256x128xf32>
    %30 = vector.extract_strided_slice %24 {offsets = [16, 0], sizes = [256, 4], strides = [1, 1]} : vector<288x4xbf16> to vector<256x4xbf16>
    %c1_20 = arith.constant 1 : index
    %c1_21 = arith.constant 1 : index
    %c0_22 = arith.constant 0 : index
    %c0_23 = arith.constant 0 : index
    %31 = vector.load %arg3[%c1_20, %c1_21, %c0_22, %c0_23] : memref<3x3x4x128xbf16, #tpu.memory_space<vmem>>, vector<1x1x4x128xbf16>
    %32 = vector.shape_cast %31 : vector<1x1x4x128xbf16> to vector<4x128xbf16>
    %cst_24 = arith.constant dense<0.000000e+00> : vector<256x128xf32>
    %33 = tpu.matmul %30, %32, %cst_24 {dimension_numbers = #tpu.dot_dimension_numbers<[1], [0], [0], [1], [0, 0, 1, 1], [], []>} : vector<256x4xbf16>, vector<4x128xbf16>, vector<256x128xf32> -> vector<256x128xf32>
    %34 = arith.addf %29, %33 : vector<256x128xf32>
    %35 = vector.extract_strided_slice %24 {offsets = [32, 0], sizes = [256, 4], strides = [1, 1]} : vector<288x4xbf16> to vector<256x4xbf16>
    %c2_25 = arith.constant 2 : index
    %c1_26 = arith.constant 1 : index
    %c0_27 = arith.constant 0 : index
    %c0_28 = arith.constant 0 : index
    %36 = vector.load %arg3[%c2_25, %c1_26, %c0_27, %c0_28] : memref<3x3x4x128xbf16, #tpu.memory_space<vmem>>, vector<1x1x4x128xbf16>
    %37 = vector.shape_cast %36 : vector<1x1x4x128xbf16> to vector<4x128xbf16>
    %cst_29 = arith.constant dense<0.000000e+00> : vector<256x128xf32>
    %38 = tpu.matmul %35, %37, %cst_29 {dimension_numbers = #tpu.dot_dimension_numbers<[1], [0], [0], [1], [0, 0, 1, 1], [], []>} : vector<256x4xbf16>, vector<4x128xbf16>, vector<256x128xf32> -> vector<256x128xf32>
    %39 = arith.addf %34, %38 : vector<256x128xf32>
    %40 = vector.extract_strided_slice %4 {offsets = [0, 2, 0], sizes = [18, 16, 4], strides = [1, 1, 1]} : vector<18x18x4xbf16> to vector<18x16x4xbf16>
    %41 = vector.shape_cast %40 : vector<18x16x4xbf16> to vector<288x4xbf16>
    %42 = vector.extract_strided_slice %41 {offsets = [0, 0], sizes = [256, 4], strides = [1, 1]} : vector<288x4xbf16> to vector<256x4xbf16>
    %c0_30 = arith.constant 0 : index
    %c2_31 = arith.constant 2 : index
    %c0_32 = arith.constant 0 : index
    %c0_33 = arith.constant 0 : index
    %43 = vector.load %arg3[%c0_30, %c2_31, %c0_32, %c0_33] : memref<3x3x4x128xbf16, #tpu.memory_space<vmem>>, vector<1x1x4x128xbf16>
    %44 = vector.shape_cast %43 : vector<1x1x4x128xbf16> to vector<4x128xbf16>
    %cst_34 = arith.constant dense<0.000000e+00> : vector<256x128xf32>
    %45 = tpu.matmul %42, %44, %cst_34 {dimension_numbers = #tpu.dot_dimension_numbers<[1], [0], [0], [1], [0, 0, 1, 1], [], []>} : vector<256x4xbf16>, vector<4x128xbf16>, vector<256x128xf32> -> vector<256x128xf32>
    %46 = arith.addf %39, %45 : vector<256x128xf32>
    %47 = vector.extract_strided_slice %41 {offsets = [16, 0], sizes = [256, 4], strides = [1, 1]} : vector<288x4xbf16> to vector<256x4xbf16>
    %c1_35 = arith.constant 1 : index
    %c2_36 = arith.constant 2 : index
    %c0_37 = arith.constant 0 : index
    %c0_38 = arith.constant 0 : index
    %48 = vector.load %arg3[%c1_35, %c2_36, %c0_37, %c0_38] : memref<3x3x4x128xbf16, #tpu.memory_space<vmem>>, vector<1x1x4x128xbf16>
    %49 = vector.shape_cast %48 : vector<1x1x4x128xbf16> to vector<4x128xbf16>
    %cst_39 = arith.constant dense<0.000000e+00> : vector<256x128xf32>
    %50 = tpu.matmul %47, %49, %cst_39 {dimension_numbers = #tpu.dot_dimension_numbers<[1], [0], [0], [1], [0, 0, 1, 1], [], []>} : vector<256x4xbf16>, vector<4x128xbf16>, vector<256x128xf32> -> vector<256x128xf32>
    %51 = arith.addf %46, %50 : vector<256x128xf32>
    %52 = vector.extract_strided_slice %41 {offsets = [32, 0], sizes = [256, 4], strides = [1, 1]} : vector<288x4xbf16> to vector<256x4xbf16>
    %c2_40 = arith.constant 2 : index
    %c2_41 = arith.constant 2 : index
    %c0_42 = arith.constant 0 : index
    %c0_43 = arith.constant 0 : index
    %53 = vector.load %arg3[%c2_40, %c2_41, %c0_42, %c0_43] : memref<3x3x4x128xbf16, #tpu.memory_space<vmem>>, vector<1x1x4x128xbf16>
    %54 = vector.shape_cast %53 : vector<1x1x4x128xbf16> to vector<4x128xbf16>
    %cst_44 = arith.constant dense<0.000000e+00> : vector<256x128xf32>
    %55 = tpu.matmul %52, %54, %cst_44 {dimension_numbers = #tpu.dot_dimension_numbers<[1], [0], [0], [1], [0, 0, 1, 1], [], []>} : vector<256x4xbf16>, vector<4x128xbf16>, vector<256x128xf32> -> vector<256x128xf32>
    %56 = arith.addf %51, %55 : vector<256x128xf32>
    %cst_45 = arith.constant dense<0.000000e+00> : vector<128xf32>
    %57 = vector.multi_reduction <add>, %56, %cst_45 [0] : vector<256x128xf32> to vector<128xf32>
    %58 = vector.shape_cast %57 : vector<128xf32> to vector<1x1x1x128xf32>
    %c0_46 = arith.constant 0 : index
    %c0_47 = arith.constant 0 : index
    %c0_48 = arith.constant 0 : index
    %c0_49 = arith.constant 0 : index
    %59 = vector.load %arg4[%c0_46, %c0_47, %c0_48, %c0_49] : memref<1x1x1x128xf32, #tpu.memory_space<vmem>>, vector<1x1x1x128xf32>
    tpu.vector_store %arg4[%c0_46, %c0_47, %c0_48, %c0_49], %58 {strides = array<i32>} : memref<1x1x1x128xf32, #tpu.memory_space<vmem>>, vector<1x1x1x128xf32>,
    %60 = arith.mulf %56, %56 : vector<256x128xf32>
    %cst_50 = arith.constant dense<0.000000e+00> : vector<128xf32>
    %61 = vector.multi_reduction <add>, %60, %cst_50 [0] : vector<256x128xf32> to vector<128xf32>
    %62 = vector.shape_cast %61 : vector<128xf32> to vector<1x1x1x128xf32>
    %c0_51 = arith.constant 0 : index
    %c0_52 = arith.constant 0 : index
    %c0_53 = arith.constant 0 : index
    %c0_54 = arith.constant 0 : index
    %63 = vector.load %arg5[%c0_51, %c0_52, %c0_53, %c0_54] : memref<1x1x1x128xf32, #tpu.memory_space<vmem>>, vector<1x1x1x128xf32>
    tpu.vector_store %arg5[%c0_51, %c0_52, %c0_53, %c0_54], %62 {strides = array<i32>} : memref<1x1x1x128xf32, #tpu.memory_space<vmem>>, vector<1x1x1x128xf32>,
    return
  }
  func.func @transform_0(%arg0: i32, %arg1: i32) -> (i32, i32, i32, i32) {
    %c0_i32 = arith.constant 0 : i32
    %c0_i32_0 = arith.constant 0 : i32
    %c0_i32_1 = arith.constant 0 : i32
    %c0_i32_2 = arith.constant 0 : i32
    return %arg0, %c0_i32, %c0_i32_0, %c0_i32_1 : i32, i32, i32, i32
  }
  func.func @transform_1(%arg0: i32, %arg1: i32) -> (i32, i32, i32, i32) {
    %c0_i32 = arith.constant 0 : i32
    %c0_i32_0 = arith.constant 0 : i32
    %c0_i32_1 = arith.constant 0 : i32
    %c0_i32_2 = arith.constant 0 : i32
    %c0_i32_3 = arith.constant 0 : i32
    return %c0_i32, %c0_i32_0, %c0_i32_1, %c0_i32_2 : i32, i32, i32, i32
  }
  func.func @transform_2(%arg0: i32, %arg1: i32) -> (i32, i32, i32, i32) {
    %c0_i32 = arith.constant 0 : i32
    %c0_i32_0 = arith.constant 0 : i32
    %c0_i32_1 = arith.constant 0 : i32
    return %arg0, %arg1, %c0_i32, %c0_i32_0 : i32, i32, i32, i32
  }
  func.func @transform_3(%arg0: i32, %arg1: i32) -> (i32, i32, i32, i32) {
    %c0_i32 = arith.constant 0 : i32
    %c0_i32_0 = arith.constant 0 : i32
    %c0_i32_1 = arith.constant 0 : i32
    return %arg0, %arg1, %c0_i32, %c0_i32_0 : i32, i32, i32, i32
  }
}

</mosaic_0001>

<llo_original>
// kernel: tpu_custom_call.1
$region0: #{tpu_custom_call.1}
  #allocation0 [shape = 'u32[]', space=smem, size = 0x4, offset = 0x4, fixed_abs, tag = 'smem constant byte address 0x4 - core index']
  #allocation1 [shape = 'u32[144,128]{1,0:T(1,128)}', space=vmem, size = 0x12000, scoped, tag = 'internal scratch']
  %s0 = inlined_call_operand.vmem [shape: bf16[2,18,18,4], index: 0, kind: input, shape index: {}]
  %s1 = inlined_call_operand.vmem [shape: bf16[3,3,4,128], index: 1, kind: input, shape index: {}]
  %s2 = inlined_call_operand.hbm [shape: f32[2,1,1,128], index: 2, kind: output, shape index: {0}]
  %s3 = inlined_call_operand.hbm [shape: f32[2,1,1,128], index: 3, kind: output, shape index: {1}]
  %4 = xla_tuple %s2, %s3
  %s5 = sld [smem:[#allocation0]]
  $region49: #{tpu_custom_call.1} parent=0
    _
  %s7 = ssub.s32 1, %s5
  %s8 = scalar_select 0, %s7, %s5
  $region1: #{tpu_custom_call.1} parent=0
    #allocation2 [shape = 'u8[1024]{0}', space=vmem, size = 0x400, scoped, tag = 'output window, operand 0']
    #allocation3 [shape = 's32[2]{0}', space=sflag, size = 0x8, scoped, tag = 'scoped memory for tpu_custom_call.1']
    #allocation4 [shape = 'u8[1024]{0}', space=vmem, size = 0x400, scoped, tag = 'output window, operand 1']
    #allocation5 [shape = 's32[2]{0}', space=sflag, size = 0x8, scoped, tag = 'scoped memory for tpu_custom_call.1']
    %9 = vsyncpa [#allocation3], 0
    %s10 = scalar_lea.sflag [#allocation3], 1
    %11 = vsyncpa %s10, 0
    %12 = vsyncpa [#allocation5], 0
    %s13 = scalar_lea.sflag [#allocation5], 1
    %14 = vsyncpa %s13, 0
    loop: start=0, step=1, limit=4
    $region2: #{tpu_custom_call.1} parent=1 // loop_pre_header
      _
    $region3: #{tpu_custom_call.1} parent=1 // loop_header
      %s16 = sphi 0, %s20
      %p17 = scmp.ge.s32.totalorder %s16, 4
      %s23 = sphi 0, %s35
      %s24 = sphi 0, %s31
      %s25 = sphi 0, %s23
      %s26 = sphi 0, %s24
      %s27 = sphi 0, %s25
      %s28 = sphi 0, %s26
      %s38 = sphi 0, %s40
      %s41 = sphi 0, %s38
      %s42 = sphi 0, %s41
      %s58 = sphi 0, %s42
      %s62 = sphi 0, %s62
      %s64 = sphi 0, %s62
      %s65 = sphi 0, %s64
      %s79 = sphi 0, %s65
      %s87 = sphi 0, %s89
      %s90 = sphi 0, %s87
      %s91 = sphi 0, %s90
      %s107 = sphi 0, %s91
      %s115 = sphi 0, %s117
      %s118 = sphi 0, %s115
      %s119 = sphi 0, %s118
      %s135 = sphi 0, %s119
    $region4: #{tpu_custom_call.1} parent=1 // loop_header_branch
      %19 = sbr.rel (%p17) target = $region8
    $region5: #{tpu_custom_call.1} parent=1 // loop_body
      %s21 = ssub.s32 %s16, 1
      %s22 = ssub.s32 %s16, 2
      %s29 = sadd.s32 1, %s24
      %p30 = scmp.ge.s32.totalorder %s29, 1
      %s31 = scalar_select %p30, 0, %s29
      %s32 = sadd.s32 1, %s23
      %s33 = scalar_select %p30, %s32, %s23
      %p34 = scmp.ge.s32.totalorder %s33, 2
      %s35 = scalar_select %p34, 0, %s33
      %s36 = ssub.s32 %s23, %s35
      %p37 = scmp.eq.s32.totalorder %s36, 0
      %s39 = sadd.s32 %s38, 1
      %s40 = scalar_select %p37, %s38, %s39
      %p43 = pneg %p37
      %p44 = scmp.eq.s32.totalorder %s16, 1
      %p45 = por %p43, %p44
      %p46 = scmp.ne.s32.totalorder %s38, %s41
      %p47 = scmp.eq.s32.totalorder %s16, 0
      %p48 = por %p46, %p47
      %p49 = scmp.ne.s32.totalorder %s38, %s41
      %p50 = scmp.eq.s32.totalorder %s21, 1
      %p51 = por %p49, %p50
      %p52 = scmp.ne.s32.totalorder %s41, %s42
      %p53 = scmp.eq.s32.totalorder %s21, 0
      %p54 = por %p52, %p53
      %p55 = scmp.ne.s32.totalorder %s41, %s42
      %p56 = scmp.eq.s32.totalorder %s22, 1
      %p57 = por %p55, %p56
      %p59 = scmp.ne.s32.totalorder %s42, %s58
      %p60 = scmp.eq.s32.totalorder %s22, 0
      %p61 = por %p59, %p60
      %s63 = sadd.s32 %s62, 1
      %p66 = scmp.eq.s32.totalorder %s16, 1
      %p67 = scmp.ne.s32.totalorder %s62, %s64
      %p68 = scmp.eq.s32.totalorder %s16, 0
      %p69 = por %p67, %p68
      %p70 = scmp.ne.s32.totalorder %s62, %s64
      %p71 = scmp.eq.s32.totalorder %s21, 1
      %p72 = por %p70, %p71
      %p73 = scmp.ne.s32.totalorder %s64, %s65
      %p74 = scmp.eq.s32.totalorder %s21, 0
      %p75 = por %p73, %p74
      %p76 = scmp.ne.s32.totalorder %s64, %s65
      %p77 = scmp.eq.s32.totalorder %s22, 1
      %p78 = por %p76, %p77
      %p80 = scmp.ne.s32.totalorder %s65, %s79
      %p81 = scmp.eq.s32.totalorder %s22, 0
      %p82 = por %p80, %p81
      %s83 = ssub.s32 %s23, %s35
      %s84 = ssub.s32 %s24, %s31
      %s85 = sor.u32 %s83, %s84
      %p86 = scmp.eq.s32.totalorder %s85, 0
      %s88 = sadd.s32 %s87, 1
      %s89 = scalar_select %p86, %s87, %s88
      %p92 = pneg %p86
      %p93 = scmp.eq.s32.totalorder %s16, 1
      %p94 = por %p92, %p93
      %p95 = scmp.ne.s32.totalorder %s87, %s90
      %p96 = scmp.eq.s32.totalorder %s16, 0
      %p97 = por %p95, %p96
      %p98 = scmp.ne.s32.totalorder %s87, %s90
      %p99 = scmp.eq.s32.totalorder %s21, 1
      %p100 = por %p98, %p99
      %p101 = scmp.ne.s32.totalorder %s90, %s91
      %p102 = scmp.eq.s32.totalorder %s21, 0
      %p103 = por %p101, %p102
      %p104 = scmp.ne.s32.totalorder %s90, %s91
      %p105 = scmp.eq.s32.totalorder %s22, 1
      %p106 = por %p104, %p105
      %p108 = scmp.ne.s32.totalorder %s91, %s107
      %p109 = scmp.eq.s32.totalorder %s22, 0
      %p110 = por %p108, %p109
      %s111 = ssub.s32 %s23, %s35
      %s112 = ssub.s32 %s24, %s31
      %s113 = sor.u32 %s111, %s112
      %p114 = scmp.eq.s32.totalorder %s113, 0
      %s116 = sadd.s32 %s115, 1
      %s117 = scalar_select %p114, %s115, %s116
      %p120 = pneg %p114
      %p121 = scmp.eq.s32.totalorder %s16, 1
      %p122 = por %p120, %p121
      %p123 = scmp.ne.s32.totalorder %s115, %s118
      %p124 = scmp.eq.s32.totalorder %s16, 0
      %p125 = por %p123, %p124
      %p126 = scmp.ne.s32.totalorder %s115, %s118
      %p127 = scmp.eq.s32.totalorder %s21, 1
      %p128 = por %p126, %p127
      %p129 = scmp.ne.s32.totalorder %s118, %s119
      %p130 = scmp.eq.s32.totalorder %s21, 0
      %p131 = por %p129, %p130
      %p132 = scmp.ne.s32.totalorder %s118, %s119
      %p133 = scmp.eq.s32.totalorder %s22, 1
      %p134 = por %p132, %p133
      %p136 = scmp.ne.s32.totalorder %s119, %s135
      %p137 = scmp.eq.s32.totalorder %s22, 0
      %p138 = por %p136, %p137
      %p139 = scmp.le.s32.totalorder 1, %s16
      %p140 = scmp.lt.s32.totalorder %s16, 3
      %p141 = pnand %p139, %p140
      %p142 = pneg %p141
      // Predicated region
      $region9: #{tpu_custom_call.1} parent=5 // pred_check
        _
      $region10: #{tpu_custom_call.1} parent=5 // pred_check_branch
        %144 = sbr.rel (%p141) target = $region12
      $region11: #{tpu_custom_call.1} parent=5 // pred_region
        %s145 = ssub.s32 %s16, 1
        // Predicated region
        $region13: #{tpu_custom_call.1} parent=11 // pred_check
          %p146 = pneg %p75
        $region14: #{tpu_custom_call.1} parent=11 // pred_check_branch
          %148 = sbr.rel (%p146) target = $region16
        $region15: #{tpu_custom_call.1} parent=11 // pred_region
          _
        $region16: #{tpu_custom_call.1} parent=11 // pred_fallthru
          _
      $region12: #{tpu_custom_call.1} parent=5 // pred_fallthru
        _
      %p149 = scmp.lt.s32.totalorder %s16, 2
      // Predicated region
      $region17: #{tpu_custom_call.1} parent=5 // pred_check
        %p150 = pneg %p149
      $region18: #{tpu_custom_call.1} parent=5 // pred_check_branch
        %152 = sbr.rel (%p150) target = $region20
      $region19: #{tpu_custom_call.1} parent=5 // pred_region
        // Predicated region
        $region21: #{tpu_custom_call.1} parent=19 // pred_check
          %p153 = pneg %p48
        $region22: #{tpu_custom_call.1} parent=19 // pred_check_branch
          %155 = sbr.rel (%p153) target = $region24
        $region23: #{tpu_custom_call.1} parent=19 // pred_region
          %p156 = scmp.lt.s32.totalorder %s23, 1
          %s157 = scalar_select %p156, %s23, 1
          %s158 = smul.addr %s157, 54
          %s159 = smul.addr %s158, 4
          %s160 = scalar_lea.vmem %s0, %s159
        $region24: #{tpu_custom_call.1} parent=19 // pred_fallthru
          _
      $region20: #{tpu_custom_call.1} parent=5 // pred_fallthru
        _
      %p161 = scmp.le.s32.totalorder 1, %s16
      %p162 = scmp.lt.s32.totalorder %s16, 3
      %p163 = pnand %p161, %p162
      %p164 = pneg %p163
      // Predicated region
      $region25: #{tpu_custom_call.1} parent=5 // pred_check
        _
      $region26: #{tpu_custom_call.1} parent=5 // pred_check_branch
        %166 = sbr.rel (%p163) target = $region28
      $region27: #{tpu_custom_call.1} parent=5 // pred_region
        %s167 = ssub.s32 %s16, 1
        %p168 = scmp.lt.s32.totalorder %s25, 1
        %s169 = scalar_select %p168, %s25, 1
        %s170 = smul.addr %s169, 54
        %s171 = smul.addr %s170, 4
        %s172 = scalar_lea.vmem %s0, %s171
        %p173 = pneg %p54
        %p174 = pneg %p51
        %p175 = pneg %p75
        %p176 = pneg %p72
        %p177 = pneg %p103
        %p178 = pneg %p100
        %s179 = sand.u32 %s90, 1
        %s180 = scalar_lea.sflag [#allocation3], %s179
        %s181 = sand.u32 %s90, 1
        %s182 = scalar_lea.vmem [#allocation2], %s181
        %p183 = pneg %p131
        %p184 = pneg %p128
        %s185 = sand.u32 %s118, 1
        %s186 = scalar_lea.sflag [#allocation5], %s185
        %s187 = sand.u32 %s118, 1
        %s188 = scalar_lea.vmem [#allocation4], %s187
        %p189 = scmp.lt.s32.totalorder %s25, 1
        %s190 = scalar_select %p189, %s25, 1
        %s191 = smul.addr %s190, 54
        %s192 = smul.addr %s191, 4
        %s193 = scalar_lea.vmem %s0, %s192
        %s195 = smul.u32 %s26, 16
        %s196 = smul.u32 %s195, 3
        %s197 = smul.addr %s196, 4
        %s198 = scalar_lea.vmem %s193, %s197
        %v199 = vld [vmem:[%s198] sm:$0xf]
        %v200 = vld [vmem:[%s198 + $0x4] sm:$0xf]
        %v201 = vld [vmem:[%s198 + $0x8] sm:$0x1]
        %v202 = vld [vmem:[%s198 + $0xc] sm:$0xf]
        %v203 = vld [vmem:[%s198 + $0x10] sm:$0xf]
        %v204 = vld [vmem:[%s198 + $0x14] sm:$0x1]
        %v205 = vld [vmem:[%s198 + $0x18] sm:$0xf]
        %v206 = vld [vmem:[%s198 + $0x1c] sm:$0xf]
        %v207 = vld [vmem:[%s198 + $0x20] sm:$0x1]
        %v208 = vld [vmem:[%s198 + $0x24] sm:$0xf]
        %v209 = vld [vmem:[%s198 + $0x28] sm:$0xf]
        %v210 = vld [vmem:[%s198 + $0x2c] sm:$0x1]
        %v211 = vld [vmem:[%s198 + $0x30] sm:$0xf]
        %v212 = vld [vmem:[%s198 + $0x34] sm:$0xf]
        %v213 = vld [vmem:[%s198 + $0x38] sm:$0x1]
        %v214 = vld [vmem:[%s198 + $0x3c] sm:$0xf]
        %v215 = vld [vmem:[%s198 + $0x40] sm:$0xf]
        %v216 = vld [vmem:[%s198 + $0x44] sm:$0x1]
        %v217 = vld [vmem:[%s198 + $0x48] sm:$0xf]
        %v218 = vld [vmem:[%s198 + $0x4c] sm:$0xf]
        %v219 = vld [vmem:[%s198 + $0x50] sm:$0x1]
        %v220 = vld [vmem:[%s198 + $0x54] sm:$0xf]
        %v221 = vld [vmem:[%s198 + $0x58] sm:$0xf]
        %v222 = vld [vmem:[%s198 + $0x5c] sm:$0x1]
        %v223 = vld [vmem:[%s198 + $0x60] sm:$0xf]
        %v224 = vld [vmem:[%s198 + $0x64] sm:$0xf]
        %v225 = vld [vmem:[%s198 + $0x68] sm:$0x1]
        %v226 = vld [vmem:[%s198 + $0x6c] sm:$0xf]
        %v227 = vld [vmem:[%s198 + $0x70] sm:$0xf]
        %v228 = vld [vmem:[%s198 + $0x74] sm:$0x1]
        %v229 = vld [vmem:[%s198 + $0x78] sm:$0xf]
        %v230 = vld [vmem:[%s198 + $0x7c] sm:$0xf]
        %v231 = vld [vmem:[%s198 + $0x80] sm:$0x1]
        %v232 = vld [vmem:[%s198 + $0x84] sm:$0xf]
        %v233 = vld [vmem:[%s198 + $0x88] sm:$0xf]
        %v234 = vld [vmem:[%s198 + $0x8c] sm:$0x1]
        %v235 = vld [vmem:[%s198 + $0x90] sm:$0xf]
        %v236 = vld [vmem:[%s198 + $0x94] sm:$0xf]
        %v237 = vld [vmem:[%s198 + $0x98] sm:$0x1]
        %v238 = vld [vmem:[%s198 + $0x9c] sm:$0xf]
        %v239 = vld [vmem:[%s198 + $0xa0] sm:$0xf]
        %v240 = vld [vmem:[%s198 + $0xa4] sm:$0x1]
        %v241 = vld [vmem:[%s198 + $0xa8] sm:$0xf]
        %v242 = vld [vmem:[%s198 + $0xac] sm:$0xf]
        %v243 = vld [vmem:[%s198 + $0xb0] sm:$0x1]
        %v244 = vld [vmem:[%s198 + $0xb4] sm:$0xf]
        %v245 = vld [vmem:[%s198 + $0xb8] sm:$0xf]
        %v246 = vld [vmem:[%s198 + $0xbc] sm:$0x1]
        %v247 = vld [vmem:[%s198 + $0xc0] sm:$0xf]
        %v248 = vld [vmem:[%s198 + $0xc4] sm:$0xf]
        %v249 = vld [vmem:[%s198 + $0xc8] sm:$0x1]
        %v250 = vld [vmem:[%s198 + $0xcc] sm:$0xf]
        %v251 = vld [vmem:[%s198 + $0xd0] sm:$0xf]
        %v252 = vld [vmem:[%s198 + $0xd4] sm:$0x1]
        %v253 = vld [vmem:[%s1] sm:$0x3]
        %s254 = scalar_lea.vmem %s1, 6
        %v255 = vld [vmem:[%s254] sm:$0x3]
        %v288 = vunpack.c.l.b16 %v202
        %v289 = vunpack.c.l.b16 %v203
        %v290 = vunpack.c.l.b16 %v205
        %v291 = vunpack.c.l.b16 %v206
        %v292 = vunpack.c.l.b16 %v208
        %v293 = vunpack.c.l.b16 %v209
        %v294 = vunpack.c.l.b16 %v211
        %v295 = vunpack.c.l.b16 %v212
        %v296 = vunpack.c.l.b16 %v214
        %v297 = vunpack.c.l.b16 %v215
        %v298 = vunpack.c.l.b16 %v217
        %v299 = vunpack.c.l.b16 %v218
        %v300 = vunpack.c.l.b16 %v220
        %v301 = vunpack.c.l.b16 %v221
        %v302 = vunpack.c.l.b16 %v223
        %v303 = vunpack.c.l.b16 %v224
        %v304 = vunpack.c.l.b16 %v226
        %v305 = vunpack.c.l.b16 %v227
        %v306 = vunpack.c.l.b16 %v229
        %v307 = vunpack.c.l.b16 %v230
        %v308 = vunpack.c.l.b16 %v232
        %v309 = vunpack.c.l.b16 %v233
        %v310 = vunpack.c.l.b16 %v235
        %v311 = vunpack.c.l.b16 %v236
        %v312 = vunpack.c.l.b16 %v238
        %v313 = vunpack.c.l.b16 %v239
        %v314 = vunpack.c.l.b16 %v241
        %v315 = vunpack.c.l.b16 %v242
        %v316 = vunpack.c.l.b16 %v244
        %v317 = vunpack.c.l.b16 %v245
        %v318 = vunpack.c.l.b16 %v247
        %v319 = vunpack.c.l.b16 %v248
        %v320 = vpack.c.b16 %v289, %v288
        %v321 = vpack.c.b16 %v291, %v290
        %v322 = vpack.c.b16 %v293, %v292
        %v323 = vpack.c.b16 %v295, %v294
        %v324 = vpack.c.b16 %v297, %v296
        %v325 = vpack.c.b16 %v299, %v298
        %v326 = vpack.c.b16 %v301, %v300
        %v327 = vpack.c.b16 %v303, %v302
        %v328 = vpack.c.b16 %v305, %v304
        %v329 = vpack.c.b16 %v307, %v306
        %v330 = vpack.c.b16 %v309, %v308
        %v331 = vpack.c.b16 %v311, %v310
        %v332 = vpack.c.b16 %v313, %v312
        %v333 = vpack.c.b16 %v315, %v314
        %v334 = vpack.c.b16 %v317, %v316
        %v335 = vpack.c.b16 %v319, %v318
        %vm336 = vcmask 31744
        %v338 = vsel %vm336, %v320, 0
        %v341 = vsel %vm336, %v321, 0
        %v344 = vsel %vm336, %v322, 0
        %v347 = vsel %vm336, %v323, 0
        %v350 = vsel %vm336, %v324, 0
        %v353 = vsel %vm336, %v325, 0
        %v356 = vsel %vm336, %v326, 0
        %v359 = vsel %vm336, %v327, 0
        %v362 = vsel %vm336, %v328, 0
        %v365 = vsel %vm336, %v329, 0
        %v368 = vsel %vm336, %v330, 0
        %v371 = vsel %vm336, %v331, 0
        %v374 = vsel %vm336, %v332, 0
        %v377 = vsel %vm336, %v333, 0
        %v380 = vsel %vm336, %v334, 0
        %v383 = vsel %vm336, %v335, 0
        %vm385 = vcmask 1041408
        %v387 = vsel %vm385, %v255, 0
        %389 = vmatprep.subr.bf16.mxu0 0
        %390 = vmatpush1.bf16.msra.mxu0 %v387
        %391 = vmatprep.subr.bf16.mxu0 0
        %392 = vmatpush1.bf16.msra.mxu0 0
        %393 = vmatprep.subr.bf16.mxu0 0
        %394 = vmatpush1.bf16.msra.mxu0 0
        %395 = vmatprep.subr.bf16.mxu0 0
        %396 = vmatpush1.bf16.msra.mxu0 0
        %397 = vmatprep.subr.bf16.mxu0 0
        %398 = vmatpush1.bf16.msra.mxu0 0
        %399 = vmatprep.subr.bf16.mxu0 0
        %400 = vmatpush1.bf16.msra.mxu0 0
        %401 = vmatprep.subr.bf16.mxu0 0
        %402 = vmatpush1.bf16.msra.mxu0 0
        %403 = vmatprep.subr.bf16.mxu0 0
        %404 = vmatpush1.bf16.msra.mxu0 0
        %405 = vmatprep.subr.bf16.mxu0 0
        %406 = vmatpush1.bf16.msra.mxu0 0
        %407 = vmatprep.subr.bf16.mxu0 0
        %408 = vmatpush1.bf16.msra.mxu0 0
        %409 = vmatprep.subr.bf16.mxu0 0
        %410 = vmatpush1.bf16.msra.mxu0 0
        %411 = vmatprep.subr.bf16.mxu0 0
        %412 = vmatpush1.bf16.msra.mxu0 0
        %413 = vmatprep.subr.bf16.mxu0 0
        %414 = vmatpush1.bf16.msra.mxu0 0
        %415 = vmatprep.subr.bf16.mxu0 0
        %416 = vmatpush1.bf16.msra.mxu0 0
        %417 = vmatprep.subr.bf16.mxu0 0
        %418 = vmatpush1.bf16.msra.mxu0 0
        %419 = vmatprep.subr.bf16.mxu0 0
        %420 = vmatpush1.bf16.msra.mxu0 0
        %421 = vmatprep.mubr.bf16.mxu0 0
        %422 = vmatmul.mubr.bf16.gmra.mrb[0].mxu0 %v338
        %v423 = vpop.f32.mrb[0].mxu0
        %v424 = vadd.f32 0.0, %v423
        %v425 = vpop.f32.mrb[0].mxu0
        %v426 = vpop.f32.mrb[0].mxu0
        %v427 = vadd.f32 0.0, %v426
        %v428 = vpop.f32.mrb[0].mxu0
        %429 = vmatprep.mubr.bf16.mxu0 0
        %430 = vmatmul.mubr.bf16.gmra.mrb[0].mxu0 %v341
        %v431 = vpop.f32.mrb[0].mxu0
        %v432 = vadd.f32 0.0, %v431
        %v433 = vpop.f32.mrb[0].mxu0
        %v434 = vpop.f32.mrb[0].mxu0
        %v435 = vadd.f32 0.0, %v434
        %v436 = vpop.f32.mrb[0].mxu0
        %437 = vmatprep.mubr.bf16.mxu0 0
        %438 = vmatmul.mubr.bf16.gmra.mrb[0].mxu0 %v344
        %v439 = vpop.f32.mrb[0].mxu0
        %v440 = vadd.f32 0.0, %v439
        %v441 = vpop.f32.mrb[0].mxu0
        %v442 = vpop.f32.mrb[0].mxu0
        %v443 = vadd.f32 0.0, %v442
        %v444 = vpop.f32.mrb[0].mxu0
        %445 = vmatprep.mubr.bf16.mxu0 0
        %446 = vmatmul.mubr.bf16.gmra.mrb[0].mxu0 %v347
        %v447 = vpop.f32.mrb[0].mxu0
        %v448 = vadd.f32 0.0, %v447
        %v449 = vpop.f32.mrb[0].mxu0
        %v450 = vpop.f32.mrb[0].mxu0
        %v451 = vadd.f32 0.0, %v450
        %v452 = vpop.f32.mrb[0].mxu0
        %453 = vmatprep.mubr.bf16.mxu0 0
        %454 = vmatmul.mubr.bf16.gmra.mrb[0].mxu0 %v350
        %v455 = vpop.f32.mrb[0].mxu0
        %v456 = vadd.f32 0.0, %v455
        %v457 = vpop.f32.mrb[0].mxu0
        %v458 = vpop.f32.mrb[0].mxu0
        %v459 = vadd.f32 0.0, %v458
        %v460 = vpop.f32.mrb[0].mxu0
        %461 = vmatprep.mubr.bf16.mxu0 0
        %462 = vmatmul.mubr.bf16.gmra.mrb[0].mxu0 %v353
        %v463 = vpop.f32.mrb[0].mxu0
        %v464 = vadd.f32 0.0, %v463
        %v465 = vpop.f32.mrb[0].mxu0
        %v466 = vpop.f32.mrb[0].mxu0
        %v467 = vadd.f32 0.0, %v466
        %v468 = vpop.f32.mrb[0].mxu0
        %469 = vmatprep.mubr.bf16.mxu0 0
        %470 = vmatmul.mubr.bf16.gmra.mrb[0].mxu0 %v356
        %v471 = vpop.f32.mrb[0].mxu0
        %v472 = vadd.f32 0.0, %v471
        %v473 = vpop.f32.mrb[0].mxu0
        %v474 = vpop.f32.mrb[0].mxu0
        %v475 = vadd.f32 0.0, %v474
        %v476 = vpop.f32.mrb[0].mxu0
        %477 = vmatprep.mubr.bf16.mxu0 0
        %478 = vmatmul.mubr.bf16.gmra.mrb[0].mxu0 %v359
        %v479 = vpop.f32.mrb[0].mxu0
        %v480 = vadd.f32 0.0, %v479
        %v481 = vpop.f32.mrb[0].mxu0
        %v482 = vpop.f32.mrb[0].mxu0
        %v483 = vadd.f32 0.0, %v482
        %v484 = vpop.f32.mrb[0].mxu0
        %485 = vmatprep.mubr.bf16.mxu0 0
        %486 = vmatmul.mubr.bf16.gmra.mrb[0].mxu0 %v362
        %v487 = vpop.f32.mrb[0].mxu0
        %v488 = vadd.f32 0.0, %v487
        %v489 = vpop.f32.mrb[0].mxu0
        %v490 = vpop.f32.mrb[0].mxu0
        %v491 = vadd.f32 0.0, %v490
        %v492 = vpop.f32.mrb[0].mxu0
        %493 = vmatprep.mubr.bf16.mxu0 0
        %494 = vmatmul.mubr.bf16.gmra.mrb[0].mxu0 %v365
        %v495 = vpop.f32.mrb[0].mxu0
        %v496 = vadd.f32 0.0, %v495
        %v497 = vpop.f32.mrb[0].mxu0
        %v498 = vpop.f32.mrb[0].mxu0
        %v499 = vadd.f32 0.0, %v498
        %v500 = vpop.f32.mrb[0].mxu0
        %501 = vmatprep.mubr.bf16.mxu0 0
        %502 = vmatmul.mubr.bf16.gmra.mrb[0].mxu0 %v368
        %v503 = vpop.f32.mrb[0].mxu0
        %v504 = vadd.f32 0.0, %v503
        %v505 = vpop.f32.mrb[0].mxu0
        %v506 = vpop.f32.mrb[0].mxu0
        %v507 = vadd.f32 0.0, %v506
        %v508 = vpop.f32.mrb[0].mxu0
        %509 = vmatprep.mubr.bf16.mxu0 0
        %510 = vmatmul.mubr.bf16.gmra.mrb[0].mxu0 %v371
        %v511 = vpop.f32.mrb[0].mxu0
        %v512 = vadd.f32 0.0, %v511
        %v513 = vpop.f32.mrb[0].mxu0
        %v514 = vpop.f32.mrb[0].mxu0
        %v515 = vadd.f32 0.0, %v514
        %v516 = vpop.f32.mrb[0].mxu0
        %517 = vmatprep.mubr.bf16.mxu0 0
        %518 = vmatmul.mubr.bf16.gmra.mrb[0].mxu0 %v374
        %v519 = vpop.f32.mrb[0].mxu0
        %v520 = vadd.f32 0.0, %v519
        %v521 = vpop.f32.mrb[0].mxu0
        %v522 = vpop.f32.mrb[0].mxu0
        %v523 = vadd.f32 0.0, %v522
        %v524 = vpop.f32.mrb[0].mxu0
        %525 = vmatprep.mubr.bf16.mxu0 0
        %526 = vmatmul.mubr.bf16.gmra.mrb[0].mxu0 %v377
        %v527 = vpop.f32.mrb[0].mxu0
        %v528 = vadd.f32 0.0, %v527
        %v529 = vpop.f32.mrb[0].mxu0
        %v530 = vpop.f32.mrb[0].mxu0
        %v531 = vadd.f32 0.0, %v530
        %v532 = vpop.f32.mrb[0].mxu0
        %533 = vmatprep.mubr.bf16.mxu0 0
        %534 = vmatmul.mubr.bf16.gmra.mrb[0].mxu0 %v380
        %v535 = vpop.f32.mrb[0].mxu0
        %v536 = vadd.f32 0.0, %v535
        %v537 = vpop.f32.mrb[0].mxu0
        %v538 = vpop.f32.mrb[0].mxu0
        %v539 = vadd.f32 0.0, %v538
        %v540 = vpop.f32.mrb[0].mxu0
        %541 = vmatprep.mubr.bf16.mxu0 0
        %542 = vmatmul.mubr.bf16.gmra.mrb[0].mxu0 %v383
        %v543 = vpop.f32.mrb[0].mxu0
        %v544 = vadd.f32 0.0, %v543
        %v545 = vpop.f32.mrb[0].mxu0
        %v546 = vpop.f32.mrb[0].mxu0
        %v547 = vadd.f32 0.0, %v546
        %v548 = vpop.f32.mrb[0].mxu0
        %549 = vdwg.mxu0
        %v552 = vunpack.c.l.b16 %v199
        %v553 = vunpack.c.l.b16 %v200
        %v554 = vpack.c.b16 %v553, %v552
        %v556 = vsel %vm336, %v554, 0
        %v559 = vsel %vm385, %v253, 0
        %561 = vmatprep.subr.bf16.mxu0 0
        %562 = vmatpush1.bf16.msra.mxu0 %v559
        %563 = vmatprep.subr.bf16.mxu0 0
        %564 = vmatpush1.bf16.msra.mxu0 0
        %565 = vmatprep.subr.bf16.mxu0 0
        %566 = vmatpush1.bf16.msra.mxu0 0
        %567 = vmatprep.subr.bf16.mxu0 0
        %568 = vmatpush1.bf16.msra.mxu0 0
        %569 = vmatprep.subr.bf16.mxu0 0
        %570 = vmatpush1.bf16.msra.mxu0 0
        %571 = vmatprep.subr.bf16.mxu0 0
        %572 = vmatpush1.bf16.msra.mxu0 0
        %573 = vmatprep.subr.bf16.mxu0 0
        %574 = vmatpush1.bf16.msra.mxu0 0
        %575 = vmatprep.subr.bf16.mxu0 0
        %576 = vmatpush1.bf16.msra.mxu0 0
        %577 = vmatprep.subr.bf16.mxu0 0
        %578 = vmatpush1.bf16.msra.mxu0 0
        %579 = vmatprep.subr.bf16.mxu0 0
        %580 = vmatpush1.bf16.msra.mxu0 0
        %581 = vmatprep.subr.bf16.mxu0 0
        %582 = vmatpush1.bf16.msra.mxu0 0
        %583 = vmatprep.subr.bf16.mxu0 0
        %584 = vmatpush1.bf16.msra.mxu0 0
        %585 = vmatprep.subr.bf16.mxu0 0
        %586 = vmatpush1.bf16.msra.mxu0 0
        %587 = vmatprep.subr.bf16.mxu0 0
        %588 = vmatpush1.bf16.msra.mxu0 0
        %589 = vmatprep.subr.bf16.mxu0 0
        %590 = vmatpush1.bf16.msra.mxu0 0
        %591 = vmatprep.subr.bf16.mxu0 0
        %592 = vmatpush1.bf16.msra.mxu0 0
        %593 = vmatprep.mubr.bf16.mxu0 0
        %594 = vmatmul.mubr.bf16.gmra.mrb[0].mxu0 %v556
        %v595 = vpop.f32.mrb[0].mxu0
        %v596 = vadd.f32 %v424, %v595
        %v597 = vpop.f32.mrb[0].mxu0
        %v598 = vpop.f32.mrb[0].mxu0
        %v599 = vadd.f32 %v427, %v598
        %v600 = vpop.f32.mrb[0].mxu0
        %601 = vmatprep.mubr.bf16.mxu0 0
        %602 = vmatmul.mubr.bf16.gmra.mrb[0].mxu0 %v338
        %v603 = vpop.f32.mrb[0].mxu0
        %v604 = vadd.f32 %v432, %v603
        %v605 = vpop.f32.mrb[0].mxu0
        %v606 = vpop.f32.mrb[0].mxu0
        %v607 = vadd.f32 %v435, %v606
        %v608 = vpop.f32.mrb[0].mxu0
        %609 = vmatprep.mubr.bf16.mxu0 0
        %610 = vmatmul.mubr.bf16.gmra.mrb[0].mxu0 %v341
        %v611 = vpop.f32.mrb[0].mxu0
        %v612 = vadd.f32 %v440, %v611
        %v613 = vpop.f32.mrb[0].mxu0
        %v614 = vpop.f32.mrb[0].mxu0
        %v615 = vadd.f32 %v443, %v614
        %v616 = vpop.f32.mrb[0].mxu0
        %617 = vmatprep.mubr.bf16.mxu0 0
        %618 = vmatmul.mubr.bf16.gmra.mrb[0].mxu0 %v344
        %v619 = vpop.f32.mrb[0].mxu0
        %v620 = vadd.f32 %v448, %v619
        %v621 = vpop.f32.mrb[0].mxu0
        %v622 = vpop.f32.mrb[0].mxu0
        %v623 = vadd.f32 %v451, %v622
        %v624 = vpop.f32.mrb[0].mxu0
        %625 = vmatprep.mubr.bf16.mxu0 0
        %626 = vmatmul.mubr.bf16.gmra.mrb[0].mxu0 %v347
        %v627 = vpop.f32.mrb[0].mxu0
        %v628 = vadd.f32 %v456, %v627
        %v629 = vpop.f32.mrb[0].mxu0
        %v630 = vpop.f32.mrb[0].mxu0
        %v631 = vadd.f32 %v459, %v630
        %v632 = vpop.f32.mrb[0].mxu0
        %633 = vmatprep.mubr.bf16.mxu0 0
        %634 = vmatmul.mubr.bf16.gmra.mrb[0].mxu0 %v350
        %v635 = vpop.f32.mrb[0].mxu0
        %v636 = vadd.f32 %v464, %v635
        %v637 = vpop.f32.mrb[0].mxu0
        %v638 = vpop.f32.mrb[0].mxu0
        %v639 = vadd.f32 %v467, %v638
        %v640 = vpop.f32.mrb[0].mxu0
        %641 = vmatprep.mubr.bf16.mxu0 0
        %642 = vmatmul.mubr.bf16.gmra.mrb[0].mxu0 %v353
        %v643 = vpop.f32.mrb[0].mxu0
        %v644 = vadd.f32 %v472, %v643
        %v645 = vpop.f32.mrb[0].mxu0
        %v646 = vpop.f32.mrb[0].mxu0
        %v647 = vadd.f32 %v475, %v646
        %v648 = vpop.f32.mrb[0].mxu0
        %649 = vmatprep.mubr.bf16.mxu0 0
        %650 = vmatmul.mubr.bf16.gmra.mrb[0].mxu0 %v356
        %v651 = vpop.f32.mrb[0].mxu0
        %v652 = vadd.f32 %v480, %v651
        %v653 = vpop.f32.mrb[0].mxu0
        %v654 = vpop.f32.mrb[0].mxu0
        %v655 = vadd.f32 %v483, %v654
        %v656 = vpop.f32.mrb[0].mxu0
        %657 = vmatprep.mubr.bf16.mxu0 0
        %658 = vmatmul.mubr.bf16.gmra.mrb[0].mxu0 %v359
        %v659 = vpop.f32.mrb[0].mxu0
        %v660 = vadd.f32 %v488, %v659
        %v661 = vpop.f32.mrb[0].mxu0
        %v662 = vpop.f32.mrb[0].mxu0
        %v663 = vadd.f32 %v491, %v662
        %v664 = vpop.f32.mrb[0].mxu0
        %665 = vmatprep.mubr.bf16.mxu0 0
        %666 = vmatmul.mubr.bf16.gmra.mrb[0].mxu0 %v362
        %v667 = vpop.f32.mrb[0].mxu0
        %v668 = vadd.f32 %v496, %v667
        %v669 = vpop.f32.mrb[0].mxu0
        %v670 = vpop.f32.mrb[0].mxu0
        %v671 = vadd.f32 %v499, %v670
        %v672 = vpop.f32.mrb[0].mxu0
        %673 = vmatprep.mubr.bf16.mxu0 0
        %674 = vmatmul.mubr.bf16.gmra.mrb[0].mxu0 %v365
        %v675 = vpop.f32.mrb[0].mxu0
        %v676 = vadd.f32 %v504, %v675
        %v677 = vpop.f32.mrb[0].mxu0
        %v678 = vpop.f32.mrb[0].mxu0
        %v679 = vadd.f32 %v507, %v678
        %v680 = vpop.f32.mrb[0].mxu0
        %681 = vmatprep.mubr.bf16.mxu0 0
        %682 = vmatmul.mubr.bf16.gmra.mrb[0].mxu0 %v368
        %v683 = vpop.f32.mrb[0].mxu0
        %v684 = vadd.f32 %v512, %v683
        %v685 = vpop.f32.mrb[0].mxu0
        %v686 = vpop.f32.mrb[0].mxu0
        %v687 = vadd.f32 %v515, %v686
        %v688 = vpop.f32.mrb[0].mxu0
        %689 = vmatprep.mubr.bf16.mxu0 0
        %690 = vmatmul.mubr.bf16.gmra.mrb[0].mxu0 %v371
        %v691 = vpop.f32.mrb[0].mxu0
        %v692 = vadd.f32 %v520, %v691
        %v693 = vpop.f32.mrb[0].mxu0
        %v694 = vpop.f32.mrb[0].mxu0
        %v695 = vadd.f32 %v523, %v694
        %v696 = vpop.f32.mrb[0].mxu0
        %697 = vmatprep.mubr.bf16.mxu0 0
        %698 = vmatmul.mubr.bf16.gmra.mrb[0].mxu0 %v374
        %v699 = vpop.f32.mrb[0].mxu0
        %v700 = vadd.f32 %v528, %v699
        %v701 = vpop.f32.mrb[0].mxu0
        %v702 = vpop.f32.mrb[0].mxu0
        %v703 = vadd.f32 %v531, %v702
        %v704 = vpop.f32.mrb[0].mxu0
        %705 = vmatprep.mubr.bf16.mxu0 0
        %706 = vmatmul.mubr.bf16.gmra.mrb[0].mxu0 %v377
        %v707 = vpop.f32.mrb[0].mxu0
        %v708 = vadd.f32 %v536, %v707
        %v709 = vpop.f32.mrb[0].mxu0
        %v710 = vpop.f32.mrb[0].mxu0
        %v711 = vadd.f32 %v539, %v710
        %v712 = vpop.f32.mrb[0].mxu0
        %713 = vmatprep.mubr.bf16.mxu0 0
        %714 = vmatmul.mubr.bf16.gmra.mrb[0].mxu0 %v380
        %v715 = vpop.f32.mrb[0].mxu0
        %v716 = vadd.f32 %v544, %v715
        %v717 = vpop.f32.mrb[0].mxu0
        %v718 = vpop.f32.mrb[0].mxu0
        %v719 = vadd.f32 %v547, %v718
        %v720 = vpop.f32.mrb[0].mxu0
        %721 = vdwg.mxu0
        %s722 = scalar_lea.vmem %s1, 12
        %v723 = vld [vmem:[%s722] sm:$0x3]
        %v726 = vunpack.c.l.b16 %v250
        %v727 = vunpack.c.l.b16 %v251
        %v728 = vpack.c.b16 %v727, %v726
        %v730 = vsel %vm336, %v728, 0
        %v733 = vsel %vm385, %v723, 0
        %735 = vmatprep.subr.bf16.mxu0 0
        %736 = vmatpush1.bf16.msra.mxu0 %v733
        %737 = vmatprep.subr.bf16.mxu0 0
        %738 = vmatpush1.bf16.msra.mxu0 0
        %739 = vmatprep.subr.bf16.mxu0 0
        %740 = vmatpush1.bf16.msra.mxu0 0
        %741 = vmatprep.subr.bf16.mxu0 0
        %742 = vmatpush1.bf16.msra.mxu0 0
        %743 = vmatprep.subr.bf16.mxu0 0
        %744 = vmatpush1.bf16.msra.mxu0 0
        %745 = vmatprep.subr.bf16.mxu0 0
        %746 = vmatpush1.bf16.msra.mxu0 0
        %747 = vmatprep.subr.bf16.mxu0 0
        %748 = vmatpush1.bf16.msra.mxu0 0
        %749 = vmatprep.subr.bf16.mxu0 0
        %750 = vmatpush1.bf16.msra.mxu0 0
        %751 = vmatprep.subr.bf16.mxu0 0
        %752 = vmatpush1.bf16.msra.mxu0 0
        %753 = vmatprep.subr.bf16.mxu0 0
        %754 = vmatpush1.bf16.msra.mxu0 0
        %755 = vmatprep.subr.bf16.mxu0 0
        %756 = vmatpush1.bf16.msra.mxu0 0
        %757 = vmatprep.subr.bf16.mxu0 0
        %758 = vmatpush1.bf16.msra.mxu0 0
        %759 = vmatprep.subr.bf16.mxu0 0
        %760 = vmatpush1.bf16.msra.mxu0 0
        %761 = vmatprep.subr.bf16.mxu0 0
        %762 = vmatpush1.bf16.msra.mxu0 0
        %763 = vmatprep.subr.bf16.mxu0 0
        %764 = vmatpush1.bf16.msra.mxu0 0
        %765 = vmatprep.subr.bf16.mxu0 0
        %766 = vmatpush1.bf16.msra.mxu0 0
        %767 = vmatprep.mubr.bf16.mxu0 0
        %768 = vmatmul.mubr.bf16.gmra.mrb[0].mxu0 %v341
        %v769 = vpop.f32.mrb[0].mxu0
        %v770 = vadd.f32 0.0, %v769
        %v771 = vpop.f32.mrb[0].mxu0
        %v772 = vpop.f32.mrb[0].mxu0
        %v773 = vadd.f32 0.0, %v772
        %v774 = vpop.f32.mrb[0].mxu0
        %775 = vmatprep.mubr.bf16.mxu0 0
        %776 = vmatmul.mubr.bf16.gmra.mrb[0].mxu0 %v344
        %v777 = vpop.f32.mrb[0].mxu0
        %v778 = vadd.f32 0.0, %v777
        %v779 = vpop.f32.mrb[0].mxu0
        %v780 = vpop.f32.mrb[0].mxu0
        %v781 = vadd.f32 0.0, %v780
        %v782 = vpop.f32.mrb[0].mxu0
        %783 = vmatprep.mubr.bf16.mxu0 0
        %784 = vmatmul.mubr.bf16.gmra.mrb[0].mxu0 %v347
        %v785 = vpop.f32.mrb[0].mxu0
        %v786 = vadd.f32 0.0, %v785
        %v787 = vpop.f32.mrb[0].mxu0
        %v788 = vpop.f32.mrb[0].mxu0
        %v789 = vadd.f32 0.0, %v788
        %v790 = vpop.f32.mrb[0].mxu0
        %791 = vmatprep.mubr.bf16.mxu0 0
        %792 = vmatmul.mubr.bf16.gmra.mrb[0].mxu0 %v350
        %v793 = vpop.f32.mrb[0].mxu0
        %v794 = vadd.f32 0.0, %v793
        %v795 = vpop.f32.mrb[0].mxu0
        %v796 = vpop.f32.mrb[0].mxu0
        %v797 = vadd.f32 0.0, %v796
        %v798 = vpop.f32.mrb[0].mxu0
        %799 = vmatprep.mubr.bf16.mxu0 0
        %800 = vmatmul.mubr.bf16.gmra.mrb[0].mxu0 %v353
        %v801 = vpop.f32.mrb[0].mxu0
        %v802 = vadd.f32 0.0, %v801
        %v803 = vpop.f32.mrb[0].mxu0
        %v804 = vpop.f32.mrb[0].mxu0
        %v805 = vadd.f32 0.0, %v804
        %v806 = vpop.f32.mrb[0].mxu0
        %807 = vmatprep.mubr.bf16.mxu0 0
        %808 = vmatmul.mubr.bf16.gmra.mrb[0].mxu0 %v356
        %v809 = vpop.f32.mrb[0].mxu0
        %v810 = vadd.f32 0.0, %v809
        %v811 = vpop.f32.mrb[0].mxu0
        %v812 = vpop.f32.mrb[0].mxu0
        %v813 = vadd.f32 0.0, %v812
        %v814 = vpop.f32.mrb[0].mxu0
        %815 = vmatprep.mubr.bf16.mxu0 0
        %816 = vmatmul.mubr.bf16.gmra.mrb[0].mxu0 %v359
        %v817 = vpop.f32.mrb[0].mxu0
        %v818 = vadd.f32 0.0, %v817
        %v819 = vpop.f32.mrb[0].mxu0
        %v820 = vpop.f32.mrb[0].mxu0
        %v821 = vadd.f32 0.0, %v820
        %v822 = vpop.f32.mrb[0].mxu0
        %823 = vmatprep.mubr.bf16.mxu0 0
        %824 = vmatmul.mubr.bf16.gmra.mrb[0].mxu0 %v362
        %v825 = vpop.f32.mrb[0].mxu0
        %v826 = vadd.f32 0.0, %v825
        %v827 = vpop.f32.mrb[0].mxu0
        %v828 = vpop.f32.mrb[0].mxu0
        %v829 = vadd.f32 0.0, %v828
        %v830 = vpop.f32.mrb[0].mxu0
        %831 = vmatprep.mubr.bf16.mxu0 0
        %832 = vmatmul.mubr.bf16.gmra.mrb[0].mxu0 %v365
        %v833 = vpop.f32.mrb[0].mxu0
        %v834 = vadd.f32 0.0, %v833
        %v835 = vpop.f32.mrb[0].mxu0
        %v836 = vpop.f32.mrb[0].mxu0
        %v837 = vadd.f32 0.0, %v836
        %v838 = vpop.f32.mrb[0].mxu0
        %839 = vmatprep.mubr.bf16.mxu0 0
        %840 = vmatmul.mubr.bf16.gmra.mrb[0].mxu0 %v368
        %v841 = vpop.f32.mrb[0].mxu0
        %v842 = vadd.f32 0.0, %v841
        %v843 = vpop.f32.mrb[0].mxu0
        %v844 = vpop.f32.mrb[0].mxu0
        %v845 = vadd.f32 0.0, %v844
        %v846 = vpop.f32.mrb[0].mxu0
        %847 = vmatprep.mubr.bf16.mxu0 0
        %848 = vmatmul.mubr.bf16.gmra.mrb[0].mxu0 %v371
        %v849 = vpop.f32.mrb[0].mxu0
        %v850 = vadd.f32 0.0, %v849
        %v851 = vpop.f32.mrb[0].mxu0
        %v852 = vpop.f32.mrb[0].mxu0
        %v853 = vadd.f32 0.0, %v852
        %v854 = vpop.f32.mrb[0].mxu0
        %855 = vmatprep.mubr.bf16.mxu0 0
        %856 = vmatmul.mubr.bf16.gmra.mrb[0].mxu0 %v374
        %v857 = vpop.f32.mrb[0].mxu0
        %v858 = vadd.f32 0.0, %v857
        %v859 = vpop.f32.mrb[0].mxu0
        %v860 = vpop.f32.mrb[0].mxu0
        %v861 = vadd.f32 0.0, %v860
        %v862 = vpop.f32.mrb[0].mxu0
        %863 = vmatprep.mubr.bf16.mxu0 0
        %864 = vmatmul.mubr.bf16.gmra.mrb[0].mxu0 %v377
        %v865 = vpop.f32.mrb[0].mxu0
        %v866 = vadd.f32 0.0, %v865
        %v867 = vpop.f32.mrb[0].mxu0
        %v868 = vpop.f32.mrb[0].mxu0
        %v869 = vadd.f32 0.0, %v868
        %v870 = vpop.f32.mrb[0].mxu0
        %871 = vmatprep.mubr.bf16.mxu0 0
        %872 = vmatmul.mubr.bf16.gmra.mrb[0].mxu0 %v380
        %v873 = vpop.f32.mrb[0].mxu0
        %v874 = vadd.f32 0.0, %v873
        %v875 = vpop.f32.mrb[0].mxu0
        %v876 = vpop.f32.mrb[0].mxu0
        %v877 = vadd.f32 0.0, %v876
        %v878 = vpop.f32.mrb[0].mxu0
        %879 = vmatprep.mubr.bf16.mxu0 0
        %880 = vmatmul.mubr.bf16.gmra.mrb[0].mxu0 %v383
        %v881 = vpop.f32.mrb[0].mxu0
        %v882 = vadd.f32 0.0, %v881
        %v883 = vpop.f32.mrb[0].mxu0
        %v884 = vpop.f32.mrb[0].mxu0
        %v885 = vadd.f32 0.0, %v884
        %v886 = vpop.f32.mrb[0].mxu0
        %887 = vmatprep.mubr.bf16.mxu0 0
        %888 = vmatmul.mubr.bf16.gmra.mrb[0].mxu0 %v730
        %v889 = vpop.f32.mrb[0].mxu0
        %v890 = vadd.f32 0.0, %v889
        %v891 = vpop.f32.mrb[0].mxu0
        %v892 = vpop.f32.mrb[0].mxu0
        %v893 = vadd.f32 0.0, %v892
        %v894 = vpop.f32.mrb[0].mxu0
        %895 = vdwg.mxu0
        %v896 = vadd.f32 %v596, %v770
        %v897 = vadd.f32 %v599, %v773
        %v898 = vadd.f32 %v604, %v778
        %v899 = vadd.f32 %v607, %v781
        %v900 = vadd.f32 %v612, %v786
        %v901 = vadd.f32 %v615, %v789
        %v902 = vadd.f32 %v620, %v794
        %v903 = vadd.f32 %v623, %v797
        %v904 = vadd.f32 %v628, %v802
        %v905 = vadd.f32 %v631, %v805
        %v906 = vadd.f32 %v636, %v810
        %v907 = vadd.f32 %v639, %v813
        %v908 = vadd.f32 %v644, %v818
        %v909 = vadd.f32 %v647, %v821
        %v910 = vadd.f32 %v652, %v826
        %v911 = vadd.f32 %v655, %v829
        %v912 = vadd.f32 %v660, %v834
        %v913 = vadd.f32 %v663, %v837
        %v914 = vadd.f32 %v668, %v842
        %v915 = vadd.f32 %v671, %v845
        %v916 = vadd.f32 %v676, %v850
        %v917 = vadd.f32 %v679, %v853
        %v918 = vadd.f32 %v684, %v858
        %v919 = vadd.f32 %v687, %v861
        %v920 = vadd.f32 %v692, %v866
        %v921 = vadd.f32 %v695, %v869
        %v922 = vadd.f32 %v700, %v874
        %v923 = vadd.f32 %v703, %v877
        %v924 = vadd.f32 %v708, %v882
        %v925 = vadd.f32 %v711, %v885
        %v926 = vadd.f32 %v716, %v890
        %v927 = vadd.f32 %v719, %v893
        %vm928 = vsmask.f32 3328
        %vm929 = vsmask.f32 7440
        %vm930 = vmor %vm928, %vm929
        %v932 = vshrl.u32 %v199, 16
        %v934 = vrot.slane %v932, 4
        %v935 = vshll.u32 %v199, 16
        %v937 = vrot.slane %v935, 5
        %v938 = vor.u32 %v934, %v937
        %v939 = vrot.slane %v938, 4
        %v941 = vshll.u32 %v200, 16
        %v943 = vrot.slane %v941, 5
        %v944 = vsel %vm930, %v939, %v943
        %v945 = vshrl.u32 %v200, 16
        %v947 = vrot.slane %v945, 4
        %v948 = vor.u32 %v947, %v943
        %v949 = vrot.slane %v948, 4
        %v951 = vshll.u32 %v201, 16
        %v953 = vrot.slane %v951, 5
        %v954 = vsel %vm930, %v949, %v953
        %v956 = vshrl.u32 %v202, 16
        %v958 = vrot.slane %v956, 4
        %v959 = vshll.u32 %v202, 16
        %v961 = vrot.slane %v959, 5
        %v962 = vor.u32 %v958, %v961
        %v963 = vrot.slane %v962, 4
        %v965 = vshll.u32 %v203, 16
        %v967 = vrot.slane %v965, 5
        %v968 = vsel %vm930, %v963, %v967
        %v969 = vshrl.u32 %v203, 16
        %v971 = vrot.slane %v969, 4
        %v972 = vor.u32 %v971, %v967
        %v973 = vrot.slane %v972, 4
        %v975 = vshll.u32 %v204, 16
        %v977 = vrot.slane %v975, 5
        %v978 = vsel %vm930, %v973, %v977
        %v980 = vshrl.u32 %v205, 16
        %v982 = vrot.slane %v980, 4
        %v983 = vshll.u32 %v205, 16
        %v985 = vrot.slane %v983, 5
        %v986 = vor.u32 %v982, %v985
        %v987 = vrot.slane %v986, 4
        %v989 = vshll.u32 %v206, 16
        %v991 = vrot.slane %v989, 5
        %v992 = vsel %vm930, %v987, %v991
        %v993 = vshrl.u32 %v206, 16
        %v995 = vrot.slane %v993, 4
        %v996 = vor.u32 %v995, %v991
        %v997 = vrot.slane %v996, 4
        %v999 = vshll.u32 %v207, 16
        %v1001 = vrot.slane %v999, 5
        %v1002 = vsel %vm930, %v997, %v1001
        %v1004 = vshrl.u32 %v208, 16
        %v1006 = vrot.slane %v1004, 4
        %v1007 = vshll.u32 %v208, 16
        %v1009 = vrot.slane %v1007, 5
        %v1010 = vor.u32 %v1006, %v1009
        %v1011 = vrot.slane %v1010, 4
        %v1013 = vshll.u32 %v209, 16
        %v1015 = vrot.slane %v1013, 5
        %v1016 = vsel %vm930, %v1011, %v1015
        %v1017 = vshrl.u32 %v209, 16
        %v1019 = vrot.slane %v1017, 4
        %v1020 = vor.u32 %v1019, %v1015
        %v1021 = vrot.slane %v1020, 4
        %v1023 = vshll.u32 %v210, 16
        %v1025 = vrot.slane %v1023, 5
        %v1026 = vsel %vm930, %v1021, %v1025
        %v1028 = vshrl.u32 %v211, 16
        %v1030 = vrot.slane %v1028, 4
        %v1031 = vshll.u32 %v211, 16
        %v1033 = vrot.slane %v1031, 5
        %v1034 = vor.u32 %v1030, %v1033
        %v1035 = vrot.slane %v1034, 4
        %v1037 = vshll.u32 %v212, 16
        %v1039 = vrot.slane %v1037, 5
        %v1040 = vsel %vm930, %v1035, %v1039
        %v1041 = vshrl.u32 %v212, 16
        %v1043 = vrot.slane %v1041, 4
        %v1044 = vor.u32 %v1043, %v1039
        %v1045 = vrot.slane %v1044, 4
        %v1047 = vshll.u32 %v213, 16
        %v1049 = vrot.slane %v1047, 5
        %v1050 = vsel %vm930, %v1045, %v1049
        %v1052 = vshrl.u32 %v214, 16
        %v1054 = vrot.slane %v1052, 4
        %v1055 = vshll.u32 %v214, 16
        %v1057 = vrot.slane %v1055, 5
        %v1058 = vor.u32 %v1054, %v1057
        %v1059 = vrot.slane %v1058, 4
        %v1061 = vshll.u32 %v215, 16
        %v1063 = vrot.slane %v1061, 5
        %v1064 = vsel %vm930, %v1059, %v1063
        %v1065 = vshrl.u32 %v215, 16
        %v1067 = vrot.slane %v1065, 4
        %v1068 = vor.u32 %v1067, %v1063
        %v1069 = vrot.slane %v1068, 4
        %v1071 = vshll.u32 %v216, 16
        %v1073 = vrot.slane %v1071, 5
        %v1074 = vsel %vm930, %v1069, %v1073
        %v1076 = vshrl.u32 %v217, 16
        %v1078 = vrot.slane %v1076, 4
        %v1079 = vshll.u32 %v217, 16
        %v1081 = vrot.slane %v1079, 5
        %v1082 = vor.u32 %v1078, %v1081
        %v1083 = vrot.slane %v1082, 4
        %v1085 = vshll.u32 %v218, 16
        %v1087 = vrot.slane %v1085, 5
        %v1088 = vsel %vm930, %v1083, %v1087
        %v1089 = vshrl.u32 %v218, 16
        %v1091 = vrot.slane %v1089, 4
        %v1092 = vor.u32 %v1091, %v1087
        %v1093 = vrot.slane %v1092, 4
        %v1095 = vshll.u32 %v219, 16
        %v1097 = vrot.slane %v1095, 5
        %v1098 = vsel %vm930, %v1093, %v1097
        %v1100 = vshrl.u32 %v220, 16
        %v1102 = vrot.slane %v1100, 4
        %v1103 = vshll.u32 %v220, 16
        %v1105 = vrot.slane %v1103, 5
        %v1106 = vor.u32 %v1102, %v1105
        %v1107 = vrot.slane %v1106, 4
        %v1109 = vshll.u32 %v221, 16
        %v1111 = vrot.slane %v1109, 5
        %v1112 = vsel %vm930, %v1107, %v1111
        %v1113 = vshrl.u32 %v221, 16
        %v1115 = vrot.slane %v1113, 4
        %v1116 = vor.u32 %v1115, %v1111
        %v1117 = vrot.slane %v1116, 4
        %v1119 = vshll.u32 %v222, 16
        %v1121 = vrot.slane %v1119, 5
        %v1122 = vsel %vm930, %v1117, %v1121
        %v1124 = vshrl.u32 %v223, 16
        %v1126 = vrot.slane %v1124, 4
        %v1127 = vshll.u32 %v223, 16
        %v1129 = vrot.slane %v1127, 5
        %v1130 = vor.u32 %v1126, %v1129
        %v1131 = vrot.slane %v1130, 4
        %v1133 = vshll.u32 %v224, 16
        %v1135 = vrot.slane %v1133, 5
        %v1136 = vsel %vm930, %v1131, %v1135
        %v1137 = vshrl.u32 %v224, 16
        %v1139 = vrot.slane %v1137, 4
        %v1140 = vor.u32 %v1139, %v1135
        %v1141 = vrot.slane %v1140, 4
        %v1143 = vshll.u32 %v225, 16
        %v1145 = vrot.slane %v1143, 5
        %v1146 = vsel %vm930, %v1141, %v1145
        %v1148 = vshrl.u32 %v226, 16
        %v1150 = vrot.slane %v1148, 4
        %v1151 = vshll.u32 %v226, 16
        %v1153 = vrot.slane %v1151, 5
        %v1154 = vor.u32 %v1150, %v1153
        %v1155 = vrot.slane %v1154, 4
        %v1157 = vshll.u32 %v227, 16
        %v1159 = vrot.slane %v1157, 5
        %v1160 = vsel %vm930, %v1155, %v1159
        %v1161 = vshrl.u32 %v227, 16
        %v1163 = vrot.slane %v1161, 4
        %v1164 = vor.u32 %v1163, %v1159
        %v1165 = vrot.slane %v1164, 4
        %v1167 = vshll.u32 %v228, 16
        %v1169 = vrot.slane %v1167, 5
        %v1170 = vsel %vm930, %v1165, %v1169
        %v1172 = vshrl.u32 %v229, 16
        %v1174 = vrot.slane %v1172, 4
        %v1175 = vshll.u32 %v229, 16
        %v1177 = vrot.slane %v1175, 5
        %v1178 = vor.u32 %v1174, %v1177
        %v1179 = vrot.slane %v1178, 4
        %v1181 = vshll.u32 %v230, 16
        %v1183 = vrot.slane %v1181, 5
        %v1184 = vsel %vm930, %v1179, %v1183
        %v1185 = vshrl.u32 %v230, 16
        %v1187 = vrot.slane %v1185, 4
        %v1188 = vor.u32 %v1187, %v1183
        %v1189 = vrot.slane %v1188, 4
        %v1191 = vshll.u32 %v231, 16
        %v1193 = vrot.slane %v1191, 5
        %v1194 = vsel %vm930, %v1189, %v1193
        %v1196 = vshrl.u32 %v232, 16
        %v1198 = vrot.slane %v1196, 4
        %v1199 = vshll.u32 %v232, 16
        %v1201 = vrot.slane %v1199, 5
        %v1202 = vor.u32 %v1198, %v1201
        %v1203 = vrot.slane %v1202, 4
        %v1205 = vshll.u32 %v233, 16
        %v1207 = vrot.slane %v1205, 5
        %v1208 = vsel %vm930, %v1203, %v1207
        %v1209 = vshrl.u32 %v233, 16
        %v1211 = vrot.slane %v1209, 4
        %v1212 = vor.u32 %v1211, %v1207
        %v1213 = vrot.slane %v1212, 4
        %v1215 = vshll.u32 %v234, 16
        %v1217 = vrot.slane %v1215, 5
        %v1218 = vsel %vm930, %v1213, %v1217
        %v1220 = vshrl.u32 %v235, 16
        %v1222 = vrot.slane %v1220, 4
        %v1223 = vshll.u32 %v235, 16
        %v1225 = vrot.slane %v1223, 5
        %v1226 = vor.u32 %v1222, %v1225
        %v1227 = vrot.slane %v1226, 4
        %v1229 = vshll.u32 %v236, 16
        %v1231 = vrot.slane %v1229, 5
        %v1232 = vsel %vm930, %v1227, %v1231
        %v1233 = vshrl.u32 %v236, 16
        %v1235 = vrot.slane %v1233, 4
        %v1236 = vor.u32 %v1235, %v1231
        %v1237 = vrot.slane %v1236, 4
        %v1239 = vshll.u32 %v237, 16
        %v1241 = vrot.slane %v1239, 5
        %v1242 = vsel %vm930, %v1237, %v1241
        %v1244 = vshrl.u32 %v238, 16
        %v1246 = vrot.slane %v1244, 4
        %v1247 = vshll.u32 %v238, 16
        %v1249 = vrot.slane %v1247, 5
        %v1250 = vor.u32 %v1246, %v1249
        %v1251 = vrot.slane %v1250, 4
        %v1253 = vshll.u32 %v239, 16
        %v1255 = vrot.slane %v1253, 5
        %v1256 = vsel %vm930, %v1251, %v1255
        %v1257 = vshrl.u32 %v239, 16
        %v1259 = vrot.slane %v1257, 4
        %v1260 = vor.u32 %v1259, %v1255
        %v1261 = vrot.slane %v1260, 4
        %v1263 = vshll.u32 %v240, 16
        %v1265 = vrot.slane %v1263, 5
        %v1266 = vsel %vm930, %v1261, %v1265
        %v1268 = vshrl.u32 %v241, 16
        %v1270 = vrot.slane %v1268, 4
        %v1271 = vshll.u32 %v241, 16
        %v1273 = vrot.slane %v1271, 5
        %v1274 = vor.u32 %v1270, %v1273
        %v1275 = vrot.slane %v1274, 4
        %v1277 = vshll.u32 %v242, 16
        %v1279 = vrot.slane %v1277, 5
        %v1280 = vsel %vm930, %v1275, %v1279
        %v1281 = vshrl.u32 %v242, 16
        %v1283 = vrot.slane %v1281, 4
        %v1284 = vor.u32 %v1283, %v1279
        %v1285 = vrot.slane %v1284, 4
        %v1287 = vshll.u32 %v243, 16
        %v1289 = vrot.slane %v1287, 5
        %v1290 = vsel %vm930, %v1285, %v1289
        %v1292 = vshrl.u32 %v244, 16
        %v1294 = vrot.slane %v1292, 4
        %v1295 = vshll.u32 %v244, 16
        %v1297 = vrot.slane %v1295, 5
        %v1298 = vor.u32 %v1294, %v1297
        %v1299 = vrot.slane %v1298, 4
        %v1301 = vshll.u32 %v245, 16
        %v1303 = vrot.slane %v1301, 5
        %v1304 = vsel %vm930, %v1299, %v1303
        %v1305 = vshrl.u32 %v245, 16
        %v1307 = vrot.slane %v1305, 4
        %v1308 = vor.u32 %v1307, %v1303
        %v1309 = vrot.slane %v1308, 4
        %v1311 = vshll.u32 %v246, 16
        %v1313 = vrot.slane %v1311, 5
        %v1314 = vsel %vm930, %v1309, %v1313
        %v1316 = vshrl.u32 %v247, 16
        %v1318 = vrot.slane %v1316, 4
        %v1319 = vshll.u32 %v247, 16
        %v1321 = vrot.slane %v1319, 5
        %v1322 = vor.u32 %v1318, %v1321
        %v1323 = vrot.slane %v1322, 4
        %v1325 = vshll.u32 %v248, 16
        %v1327 = vrot.slane %v1325, 5
        %v1328 = vsel %vm930, %v1323, %v1327
        %v1329 = vshrl.u32 %v248, 16
        %v1331 = vrot.slane %v1329, 4
        %v1332 = vor.u32 %v1331, %v1327
        %v1333 = vrot.slane %v1332, 4
        %v1335 = vshll.u32 %v249, 16
        %v1337 = vrot.slane %v1335, 5
        %v1338 = vsel %vm930, %v1333, %v1337
        %v1340 = vshrl.u32 %v250, 16
        %v1342 = vrot.slane %v1340, 4
        %v1343 = vshll.u32 %v250, 16
        %v1345 = vrot.slane %v1343, 5
        %v1346 = vor.u32 %v1342, %v1345
        %v1347 = vrot.slane %v1346, 4
        %v1349 = vshll.u32 %v251, 16
        %v1351 = vrot.slane %v1349, 5
        %v1352 = vsel %vm930, %v1347, %v1351
        %v1353 = vshrl.u32 %v251, 16
        %v1355 = vrot.slane %v1353, 4
        %v1356 = vor.u32 %v1355, %v1351
        %v1357 = vrot.slane %v1356, 4
        %v1359 = vshll.u32 %v252, 16
        %v1361 = vrot.slane %v1359, 5
        %v1362 = vsel %vm930, %v1357, %v1361
        %s1363 = scalar_lea.vmem %s1, 2
        %v1364 = vld [vmem:[%s1363] sm:$0x3]
        %v1365 = vunpack.c.l.b16 %v944
        %v1366 = vunpack.c.l.b16 %v954
        %v1367 = vunpack.c.l.b16 %v968
        %v1368 = vunpack.c.l.b16 %v978
        %v1369 = vunpack.c.l.b16 %v992
        %v1370 = vunpack.c.l.b16 %v1002
        %v1371 = vunpack.c.l.b16 %v1016
        %v1372 = vunpack.c.l.b16 %v1026
        %v1373 = vunpack.c.l.b16 %v1040
        %v1374 = vunpack.c.l.b16 %v1050
        %v1375 = vunpack.c.l.b16 %v1064
        %v1376 = vunpack.c.l.b16 %v1074
        %v1377 = vunpack.c.l.b16 %v1088
        %v1378 = vunpack.c.l.b16 %v1098
        %v1379 = vunpack.c.l.b16 %v1112
        %v1380 = vunpack.c.l.b16 %v1122
        %v1381 = vunpack.c.l.b16 %v1136
        %v1382 = vunpack.c.l.b16 %v1146
        %v1383 = vunpack.c.l.b16 %v1160
        %v1384 = vunpack.c.l.b16 %v1170
        %v1385 = vunpack.c.l.b16 %v1184
        %v1386 = vunpack.c.l.b16 %v1194
        %v1387 = vunpack.c.l.b16 %v1208
        %v1388 = vunpack.c.l.b16 %v1218
        %v1389 = vunpack.c.l.b16 %v1232
        %v1390 = vunpack.c.l.b16 %v1242
        %v1391 = vunpack.c.l.b16 %v1256
        %v1392 = vunpack.c.l.b16 %v1266
        %v1393 = vunpack.c.l.b16 %v1280
        %v1394 = vunpack.c.l.b16 %v1290
        %v1395 = vunpack.c.l.b16 %v1304
        %v1396 = vunpack.c.l.b16 %v1314
        %v1397 = vpack.c.b16 %v1366, %v1365
        %v1398 = vpack.c.b16 %v1368, %v1367
        %v1399 = vpack.c.b16 %v1370, %v1369
        %v1400 = vpack.c.b16 %v1372, %v1371
        %v1401 = vpack.c.b16 %v1374, %v1373
        %v1402 = vpack.c.b16 %v1376, %v1375
        %v1403 = vpack.c.b16 %v1378, %v1377
        %v1404 = vpack.c.b16 %v1380, %v1379
        %v1405 = vpack.c.b16 %v1382, %v1381
        %v1406 = vpack.c.b16 %v1384, %v1383
        %v1407 = vpack.c.b16 %v1386, %v1385
        %v1408 = vpack.c.b16 %v1388, %v1387
        %v1409 = vpack.c.b16 %v1390, %v1389
        %v1410 = vpack.c.b16 %v1392, %v1391
        %v1411 = vpack.c.b16 %v1394, %v1393
        %v1412 = vpack.c.b16 %v1396, %v1395
        %v1414 = vsel %vm336, %v1397, 0
        %v1417 = vsel %vm336, %v1398, 0
        %v1420 = vsel %vm336, %v1399, 0
        %v1423 = vsel %vm336, %v1400, 0
        %v1426 = vsel %vm336, %v1401, 0
        %v1429 = vsel %vm336, %v1402, 0
        %v1432 = vsel %vm336, %v1403, 0
        %v1435 = vsel %vm336, %v1404, 0
        %v1438 = vsel %vm336, %v1405, 0
        %v1441 = vsel %vm336, %v1406, 0
        %v1444 = vsel %vm336, %v1407, 0
        %v1447 = vsel %vm336, %v1408, 0
        %v1450 = vsel %vm336, %v1409, 0
        %v1453 = vsel %vm336, %v1410, 0
        %v1456 = vsel %vm336, %v1411, 0
        %v1459 = vsel %vm336, %v1412, 0
        %v1462 = vsel %vm385, %v1364, 0
        %1464 = vmatprep.subr.bf16.mxu0 0
        %1465 = vmatpush1.bf16.msra.mxu0 %v1462
        %1466 = vmatprep.subr.bf16.mxu0 0
        %1467 = vmatpush1.bf16.msra.mxu0 0
        %1468 = vmatprep.subr.bf16.mxu0 0
        %1469 = vmatpush1.bf16.msra.mxu0 0
        %1470 = vmatprep.subr.bf16.mxu0 0
        %1471 = vmatpush1.bf16.msra.mxu0 0
        %1472 = vmatprep.subr.bf16.mxu0 0
        %1473 = vmatpush1.bf16.msra.mxu0 0
        %1474 = vmatprep.subr.bf16.mxu0 0
        %1475 = vmatpush1.bf16.msra.mxu0 0
        %1476 = vmatprep.subr.bf16.mxu0 0
        %1477 = vmatpush1.bf16.msra.mxu0 0
        %1478 = vmatprep.subr.bf16.mxu0 0
        %1479 = vmatpush1.bf16.msra.mxu0 0
        %1480 = vmatprep.subr.bf16.mxu0 0
        %1481 = vmatpush1.bf16.msra.mxu0 0
        %1482 = vmatprep.subr.bf16.mxu0 0
        %1483 = vmatpush1.bf16.msra.mxu0 0
        %1484 = vmatprep.subr.bf16.mxu0 0
        %1485 = vmatpush1.bf16.msra.mxu0 0
        %1486 = vmatprep.subr.bf16.mxu0 0
        %1487 = vmatpush1.bf16.msra.mxu0 0
        %1488 = vmatprep.subr.bf16.mxu0 0
        %1489 = vmatpush1.bf16.msra.mxu0 0
        %1490 = vmatprep.subr.bf16.mxu0 0
        %1491 = vmatpush1.bf16.msra.mxu0 0
        %1492 = vmatprep.subr.bf16.mxu0 0
        %1493 = vmatpush1.bf16.msra.mxu0 0
        %1494 = vmatprep.subr.bf16.mxu0 0
        %1495 = vmatpush1.bf16.msra.mxu0 0
        %1496 = vmatprep.mubr.bf16.mxu0 0
        %1497 = vmatmul.mubr.bf16.gmra.mrb[0].mxu0 %v1414
        %v1498 = vpop.f32.mrb[0].mxu0
        %v1499 = vadd.f32 0.0, %v1498
        %v1500 = vpop.f32.mrb[0].mxu0
        %v1501 = vpop.f32.mrb[0].mxu0
        %v1502 = vadd.f32 0.0, %v1501
        %v1503 = vpop.f32.mrb[0].mxu0
        %1504 = vmatprep.mubr.bf16.mxu0 0
        %1505 = vmatmul.mubr.bf16.gmra.mrb[0].mxu0 %v1417
        %v1506 = vpop.f32.mrb[0].mxu0
        %v1507 = vadd.f32 0.0, %v1506
        %v1508 = vpop.f32.mrb[0].mxu0
        %v1509 = vpop.f32.mrb[0].mxu0
        %v1510 = vadd.f32 0.0, %v1509
        %v1511 = vpop.f32.mrb[0].mxu0
        %1512 = vmatprep.mubr.bf16.mxu0 0
        %1513 = vmatmul.mubr.bf16.gmra.mrb[0].mxu0 %v1420
        %v1514 = vpop.f32.mrb[0].mxu0
        %v1515 = vadd.f32 0.0, %v1514
        %v1516 = vpop.f32.mrb[0].mxu0
        %v1517 = vpop.f32.mrb[0].mxu0
        %v1518 = vadd.f32 0.0, %v1517
        %v1519 = vpop.f32.mrb[0].mxu0
        %1520 = vmatprep.mubr.bf16.mxu0 0
        %1521 = vmatmul.mubr.bf16.gmra.mrb[0].mxu0 %v1423
        %v1522 = vpop.f32.mrb[0].mxu0
        %v1523 = vadd.f32 0.0, %v1522
        %v1524 = vpop.f32.mrb[0].mxu0
        %v1525 = vpop.f32.mrb[0].mxu0
        %v1526 = vadd.f32 0.0, %v1525
        %v1527 = vpop.f32.mrb[0].mxu0
        %1528 = vmatprep.mubr.bf16.mxu0 0
        %1529 = vmatmul.mubr.bf16.gmra.mrb[0].mxu0 %v1426
        %v1530 = vpop.f32.mrb[0].mxu0
        %v1531 = vadd.f32 0.0, %v1530
        %v1532 = vpop.f32.mrb[0].mxu0
        %v1533 = vpop.f32.mrb[0].mxu0
        %v1534 = vadd.f32 0.0, %v1533
        %v1535 = vpop.f32.mrb[0].mxu0
        %1536 = vmatprep.mubr.bf16.mxu0 0
        %1537 = vmatmul.mubr.bf16.gmra.mrb[0].mxu0 %v1429
        %v1538 = vpop.f32.mrb[0].mxu0
        %v1539 = vadd.f32 0.0, %v1538
        %v1540 = vpop.f32.mrb[0].mxu0
        %v1541 = vpop.f32.mrb[0].mxu0
        %v1542 = vadd.f32 0.0, %v1541
        %v1543 = vpop.f32.mrb[0].mxu0
        %1544 = vmatprep.mubr.bf16.mxu0 0
        %1545 = vmatmul.mubr.bf16.gmra.mrb[0].mxu0 %v1432
        %v1546 = vpop.f32.mrb[0].mxu0
        %v1547 = vadd.f32 0.0, %v1546
        %v1548 = vpop.f32.mrb[0].mxu0
        %v1549 = vpop.f32.mrb[0].mxu0
        %v1550 = vadd.f32 0.0, %v1549
        %v1551 = vpop.f32.mrb[0].mxu0
        %1552 = vmatprep.mubr.bf16.mxu0 0
        %1553 = vmatmul.mubr.bf16.gmra.mrb[0].mxu0 %v1435
        %v1554 = vpop.f32.mrb[0].mxu0
        %v1555 = vadd.f32 0.0, %v1554
        %v1556 = vpop.f32.mrb[0].mxu0
        %v1557 = vpop.f32.mrb[0].mxu0
        %v1558 = vadd.f32 0.0, %v1557
        %v1559 = vpop.f32.mrb[0].mxu0
        %1560 = vmatprep.mubr.bf16.mxu0 0
        %1561 = vmatmul.mubr.bf16.gmra.mrb[0].mxu0 %v1438
        %v1562 = vpop.f32.mrb[0].mxu0
        %v1563 = vadd.f32 0.0, %v1562
        %v1564 = vpop.f32.mrb[0].mxu0
        %v1565 = vpop.f32.mrb[0].mxu0
        %v1566 = vadd.f32 0.0, %v1565
        %v1567 = vpop.f32.mrb[0].mxu0
        %1568 = vmatprep.mubr.bf16.mxu0 0
        %1569 = vmatmul.mubr.bf16.gmra.mrb[0].mxu0 %v1441
        %v1570 = vpop.f32.mrb[0].mxu0
        %v1571 = vadd.f32 0.0, %v1570
        %v1572 = vpop.f32.mrb[0].mxu0
        %v1573 = vpop.f32.mrb[0].mxu0
        %v1574 = vadd.f32 0.0, %v1573
        %v1575 = vpop.f32.mrb[0].mxu0
        %1576 = vmatprep.mubr.bf16.mxu0 0
        %1577 = vmatmul.mubr.bf16.gmra.mrb[0].mxu0 %v1444
        %v1578 = vpop.f32.mrb[0].mxu0
        %v1579 = vadd.f32 0.0, %v1578
        %v1580 = vpop.f32.mrb[0].mxu0
        %v1581 = vpop.f32.mrb[0].mxu0
        %v1582 = vadd.f32 0.0, %v1581
        %v1583 = vpop.f32.mrb[0].mxu0
        %1584 = vmatprep.mubr.bf16.mxu0 0
        %1585 = vmatmul.mubr.bf16.gmra.mrb[0].mxu0 %v1447
        %v1586 = vpop.f32.mrb[0].mxu0
        %v1587 = vadd.f32 0.0, %v1586
        %v1588 = vpop.f32.mrb[0].mxu0
        %v1589 = vpop.f32.mrb[0].mxu0
        %v1590 = vadd.f32 0.0, %v1589
        %v1591 = vpop.f32.mrb[0].mxu0
        %1592 = vmatprep.mubr.bf16.mxu0 0
        %1593 = vmatmul.mubr.bf16.gmra.mrb[0].mxu0 %v1450
        %v1594 = vpop.f32.mrb[0].mxu0
        %v1595 = vadd.f32 0.0, %v1594
        %v1596 = vpop.f32.mrb[0].mxu0
        %v1597 = vpop.f32.mrb[0].mxu0
        %v1598 = vadd.f32 0.0, %v1597
        %v1599 = vpop.f32.mrb[0].mxu0
        %1600 = vmatprep.mubr.bf16.mxu0 0
        %1601 = vmatmul.mubr.bf16.gmra.mrb[0].mxu0 %v1453
        %v1602 = vpop.f32.mrb[0].mxu0
        %v1603 = vadd.f32 0.0, %v1602
        %v1604 = vpop.f32.mrb[0].mxu0
        %v1605 = vpop.f32.mrb[0].mxu0
        %v1606 = vadd.f32 0.0, %v1605
        %v1607 = vpop.f32.mrb[0].mxu0
        %1608 = vmatprep.mubr.bf16.mxu0 0
        %1609 = vmatmul.mubr.bf16.gmra.mrb[0].mxu0 %v1456
        %v1610 = vpop.f32.mrb[0].mxu0
        %v1611 = vadd.f32 0.0, %v1610
        %v1612 = vpop.f32.mrb[0].mxu0
        %v1613 = vpop.f32.mrb[0].mxu0
        %v1614 = vadd.f32 0.0, %v1613
        %v1615 = vpop.f32.mrb[0].mxu0
        %1616 = vmatprep.mubr.bf16.mxu0 0
        %1617 = vmatmul.mubr.bf16.gmra.mrb[0].mxu0 %v1459
        %v1618 = vpop.f32.mrb[0].mxu0
        %v1619 = vadd.f32 0.0, %v1618
        %v1620 = vpop.f32.mrb[0].mxu0
        %v1621 = vpop.f32.mrb[0].mxu0
        %v1622 = vadd.f32 0.0, %v1621
        %v1623 = vpop.f32.mrb[0].mxu0
        %1624 = vdwg.mxu0
        %v1625 = vadd.f32 %v896, %v1499
        %v1626 = vadd.f32 %v897, %v1502
        %v1627 = vadd.f32 %v898, %v1507
        %v1628 = vadd.f32 %v899, %v1510
        %v1629 = vadd.f32 %v900, %v1515
        %v1630 = vadd.f32 %v901, %v1518
        %v1631 = vadd.f32 %v902, %v1523
        %v1632 = vadd.f32 %v903, %v1526
        %v1633 = vadd.f32 %v904, %v1531
        %v1634 = vadd.f32 %v905, %v1534
        %v1635 = vadd.f32 %v906, %v1539
        %v1636 = vadd.f32 %v907, %v1542
        %v1637 = vadd.f32 %v908, %v1547
        %v1638 = vadd.f32 %v909, %v1550
        %v1639 = vadd.f32 %v910, %v1555
        %v1640 = vadd.f32 %v911, %v1558
        %v1641 = vadd.f32 %v912, %v1563
        %v1642 = vadd.f32 %v913, %v1566
        %v1643 = vadd.f32 %v914, %v1571
        %v1644 = vadd.f32 %v915, %v1574
        %v1645 = vadd.f32 %v916, %v1579
        %v1646 = vadd.f32 %v917, %v1582
        %v1647 = vadd.f32 %v918, %v1587
        %v1648 = vadd.f32 %v919, %v1590
        %v1649 = vadd.f32 %v920, %v1595
        %v1650 = vadd.f32 %v921, %v1598
        %v1651 = vadd.f32 %v922, %v1603
        %v1652 = vadd.f32 %v923, %v1606
        %v1653 = vadd.f32 %v924, %v1611
        %v1654 = vadd.f32 %v925, %v1614
        %v1655 = vadd.f32 %v926, %v1619
        %v1656 = vadd.f32 %v927, %v1622
        %s1657 = scalar_lea.vmem %s1, 8
        %v1658 = vld [vmem:[%s1657] sm:$0x3]
        %v1659 = vunpack.c.l.b16 %v1328
        %v1660 = vunpack.c.l.b16 %v1338
        %v1661 = vpack.c.b16 %v1660, %v1659
        %v1663 = vsel %vm336, %v1661, 0
        %v1666 = vsel %vm385, %v1658, 0
        %1668 = vmatprep.subr.bf16.mxu0 0
        %1669 = vmatpush1.bf16.msra.mxu0 %v1666
        %1670 = vmatprep.subr.bf16.mxu0 0
        %1671 = vmatpush1.bf16.msra.mxu0 0
        %1672 = vmatprep.subr.bf16.mxu0 0
        %1673 = vmatpush1.bf16.msra.mxu0 0
        %1674 = vmatprep.subr.bf16.mxu0 0
        %1675 = vmatpush1.bf16.msra.mxu0 0
        %1676 = vmatprep.subr.bf16.mxu0 0
        %1677 = vmatpush1.bf16.msra.mxu0 0
        %1678 = vmatprep.subr.bf16.mxu0 0
        %1679 = vmatpush1.bf16.msra.mxu0 0
        %1680 = vmatprep.subr.bf16.mxu0 0
        %1681 = vmatpush1.bf16.msra.mxu0 0
        %1682 = vmatprep.subr.bf16.mxu0 0
        %1683 = vmatpush1.bf16.msra.mxu0 0
        %1684 = vmatprep.subr.bf16.mxu0 0
        %1685 = vmatpush1.bf16.msra.mxu0 0
        %1686 = vmatprep.subr.bf16.mxu0 0
        %1687 = vmatpush1.bf16.msra.mxu0 0
        %1688 = vmatprep.subr.bf16.mxu0 0
        %1689 = vmatpush1.bf16.msra.mxu0 0
        %1690 = vmatprep.subr.bf16.mxu0 0
        %1691 = vmatpush1.bf16.msra.mxu0 0
        %1692 = vmatprep.subr.bf16.mxu0 0
        %1693 = vmatpush1.bf16.msra.mxu0 0
        %1694 = vmatprep.subr.bf16.mxu0 0
        %1695 = vmatpush1.bf16.msra.mxu0 0
        %1696 = vmatprep.subr.bf16.mxu0 0
        %1697 = vmatpush1.bf16.msra.mxu0 0
        %1698 = vmatprep.subr.bf16.mxu0 0
        %1699 = vmatpush1.bf16.msra.mxu0 0
        %1700 = vmatprep.mubr.bf16.mxu0 0
        %1701 = vmatmul.mubr.bf16.gmra.mrb[0].mxu0 %v1417
        %v1702 = vpop.f32.mrb[0].mxu0
        %v1703 = vadd.f32 0.0, %v1702
        %v1704 = vpop.f32.mrb[0].mxu0
        %v1705 = vpop.f32.mrb[0].mxu0
        %v1706 = vadd.f32 0.0, %v1705
        %v1707 = vpop.f32.mrb[0].mxu0
        %1708 = vmatprep.mubr.bf16.mxu0 0
        %1709 = vmatmul.mubr.bf16.gmra.mrb[0].mxu0 %v1420
        %v1710 = vpop.f32.mrb[0].mxu0
        %v1711 = vadd.f32 0.0, %v1710
        %v1712 = vpop.f32.mrb[0].mxu0
        %v1713 = vpop.f32.mrb[0].mxu0
        %v1714 = vadd.f32 0.0, %v1713
        %v1715 = vpop.f32.mrb[0].mxu0
        %1716 = vmatprep.mubr.bf16.mxu0 0
        %1717 = vmatmul.mubr.bf16.gmra.mrb[0].mxu0 %v1423
        %v1718 = vpop.f32.mrb[0].mxu0
        %v1719 = vadd.f32 0.0, %v1718
        %v1720 = vpop.f32.mrb[0].mxu0
        %v1721 = vpop.f32.mrb[0].mxu0
        %v1722 = vadd.f32 0.0, %v1721
        %v1723 = vpop.f32.mrb[0].mxu0
        %1724 = vmatprep.mubr.bf16.mxu0 0
        %1725 = vmatmul.mubr.bf16.gmra.mrb[0].mxu0 %v1426
        %v1726 = vpop.f32.mrb[0].mxu0
        %v1727 = vadd.f32 0.0, %v1726
        %v1728 = vpop.f32.mrb[0].mxu0
        %v1729 = vpop.f32.mrb[0].mxu0
        %v1730 = vadd.f32 0.0, %v1729
        %v1731 = vpop.f32.mrb[0].mxu0
        %1732 = vmatprep.mubr.bf16.mxu0 0
        %1733 = vmatmul.mubr.bf16.gmra.mrb[0].mxu0 %v1429
        %v1734 = vpop.f32.mrb[0].mxu0
        %v1735 = vadd.f32 0.0, %v1734
        %v1736 = vpop.f32.mrb[0].mxu0
        %v1737 = vpop.f32.mrb[0].mxu0
        %v1738 = vadd.f32 0.0, %v1737
        %v1739 = vpop.f32.mrb[0].mxu0
        %1740 = vmatprep.mubr.bf16.mxu0 0
        %1741 = vmatmul.mubr.bf16.gmra.mrb[0].mxu0 %v1432
        %v1742 = vpop.f32.mrb[0].mxu0
        %v1743 = vadd.f32 0.0, %v1742
        %v1744 = vpop.f32.mrb[0].mxu0
        %v1745 = vpop.f32.mrb[0].mxu0
        %v1746 = vadd.f32 0.0, %v1745
        %v1747 = vpop.f32.mrb[0].mxu0
        %1748 = vmatprep.mubr.bf16.mxu0 0
        %1749 = vmatmul.mubr.bf16.gmra.mrb[0].mxu0 %v1435
        %v1750 = vpop.f32.mrb[0].mxu0
        %v1751 = vadd.f32 0.0, %v1750
        %v1752 = vpop.f32.mrb[0].mxu0
        %v1753 = vpop.f32.mrb[0].mxu0
        %v1754 = vadd.f32 0.0, %v1753
        %v1755 = vpop.f32.mrb[0].mxu0
        %1756 = vmatprep.mubr.bf16.mxu0 0
        %1757 = vmatmul.mubr.bf16.gmra.mrb[0].mxu0 %v1438
        %v1758 = vpop.f32.mrb[0].mxu0
        %v1759 = vadd.f32 0.0, %v1758
        %v1760 = vpop.f32.mrb[0].mxu0
        %v1761 = vpop.f32.mrb[0].mxu0
        %v1762 = vadd.f32 0.0, %v1761
        %v1763 = vpop.f32.mrb[0].mxu0
        %1764 = vmatprep.mubr.bf16.mxu0 0
        %1765 = vmatmul.mubr.bf16.gmra.mrb[0].mxu0 %v1441
        %v1766 = vpop.f32.mrb[0].mxu0
        %v1767 = vadd.f32 0.0, %v1766
        %v1768 = vpop.f32.mrb[0].mxu0
        %v1769 = vpop.f32.mrb[0].mxu0
        %v1770 = vadd.f32 0.0, %v1769
        %v1771 = vpop.f32.mrb[0].mxu0
        %1772 = vmatprep.mubr.bf16.mxu0 0
        %1773 = vmatmul.mubr.bf16.gmra.mrb[0].mxu0 %v1444
        %v1774 = vpop.f32.mrb[0].mxu0
        %v1775 = vadd.f32 0.0, %v1774
        %v1776 = vpop.f32.mrb[0].mxu0
        %v1777 = vpop.f32.mrb[0].mxu0
        %v1778 = vadd.f32 0.0, %v1777
        %v1779 = vpop.f32.mrb[0].mxu0
        %1780 = vmatprep.mubr.bf16.mxu0 0
        %1781 = vmatmul.mubr.bf16.gmra.mrb[0].mxu0 %v1447
        %v1782 = vpop.f32.mrb[0].mxu0
        %v1783 = vadd.f32 0.0, %v1782
        %v1784 = vpop.f32.mrb[0].mxu0
        %v1785 = vpop.f32.mrb[0].mxu0
        %v1786 = vadd.f32 0.0, %v1785
        %v1787 = vpop.f32.mrb[0].mxu0
        %1788 = vmatprep.mubr.bf16.mxu0 0
        %1789 = vmatmul.mubr.bf16.gmra.mrb[0].mxu0 %v1450
        %v1790 = vpop.f32.mrb[0].mxu0
        %v1791 = vadd.f32 0.0, %v1790
        %v1792 = vpop.f32.mrb[0].mxu0
        %v1793 = vpop.f32.mrb[0].mxu0
        %v1794 = vadd.f32 0.0, %v1793
        %v1795 = vpop.f32.mrb[0].mxu0
        %1796 = vmatprep.mubr.bf16.mxu0 0
        %1797 = vmatmul.mubr.bf16.gmra.mrb[0].mxu0 %v1453
        %v1798 = vpop.f32.mrb[0].mxu0
        %v1799 = vadd.f32 0.0, %v1798
        %v1800 = vpop.f32.mrb[0].mxu0
        %v1801 = vpop.f32.mrb[0].mxu0
        %v1802 = vadd.f32 0.0, %v1801
        %v1803 = vpop.f32.mrb[0].mxu0
        %1804 = vmatprep.mubr.bf16.mxu0 0
        %1805 = vmatmul.mubr.bf16.gmra.mrb[0].mxu0 %v1456
        %v1806 = vpop.f32.mrb[0].mxu0
        %v1807 = vadd.f32 0.0, %v1806
        %v1808 = vpop.f32.mrb[0].mxu0
        %v1809 = vpop.f32.mrb[0].mxu0
        %v1810 = vadd.f32 0.0, %v1809
        %v1811 = vpop.f32.mrb[0].mxu0
        %1812 = vmatprep.mubr.bf16.mxu0 0
        %1813 = vmatmul.mubr.bf16.gmra.mrb[0].mxu0 %v1459
        %v1814 = vpop.f32.mrb[0].mxu0
        %v1815 = vadd.f32 0.0, %v1814
        %v1816 = vpop.f32.mrb[0].mxu0
        %v1817 = vpop.f32.mrb[0].mxu0
        %v1818 = vadd.f32 0.0, %v1817
        %v1819 = vpop.f32.mrb[0].mxu0
        %1820 = vmatprep.mubr.bf16.mxu0 0
        %1821 = vmatmul.mubr.bf16.gmra.mrb[0].mxu0 %v1663
        %v1822 = vpop.f32.mrb[0].mxu0
        %v1823 = vadd.f32 0.0, %v1822
        %v1824 = vpop.f32.mrb[0].mxu0
        %v1825 = vpop.f32.mrb[0].mxu0
        %v1826 = vadd.f32 0.0, %v1825
        %v1827 = vpop.f32.mrb[0].mxu0
        %1828 = vdwg.mxu0
        %v1829 = vadd.f32 %v1625, %v1703
        %v1830 = vadd.f32 %v1626, %v1706
        %v1831 = vadd.f32 %v1627, %v1711
        %v1832 = vadd.f32 %v1628, %v1714
        %v1833 = vadd.f32 %v1629, %v1719
        %v1834 = vadd.f32 %v1630, %v1722
        %v1835 = vadd.f32 %v1631, %v1727
        %v1836 = vadd.f32 %v1632, %v1730
        %v1837 = vadd.f32 %v1633, %v1735
        %v1838 = vadd.f32 %v1634, %v1738
        %v1839 = vadd.f32 %v1635, %v1743
        %v1840 = vadd.f32 %v1636, %v1746
        %v1841 = vadd.f32 %v1637, %v1751
        %v1842 = vadd.f32 %v1638, %v1754
        %v1843 = vadd.f32 %v1639, %v1759
        %v1844 = vadd.f32 %v1640, %v1762
        %v1845 = vadd.f32 %v1641, %v1767
        %v1846 = vadd.f32 %v1642, %v1770
        %v1847 = vadd.f32 %v1643, %v1775
        %v1848 = vadd.f32 %v1644, %v1778
        %v1849 = vadd.f32 %v1645, %v1783
        %v1850 = vadd.f32 %v1646, %v1786
        %v1851 = vadd.f32 %v1647, %v1791
        %v1852 = vadd.f32 %v1648, %v1794
        %v1853 = vadd.f32 %v1649, %v1799
        %v1854 = vadd.f32 %v1650, %v1802
        %v1855 = vadd.f32 %v1651, %v1807
        %v1856 = vadd.f32 %v1652, %v1810
        %v1857 = vadd.f32 %v1653, %v1815
        %v1858 = vadd.f32 %v1654, %v1818
        %v1859 = vadd.f32 %v1655, %v1823
        %v1860 = vadd.f32 %v1656, %v1826
        %s1861 = scalar_lea.vmem %s1, 14
        %v1862 = vld [vmem:[%s1861] sm:$0x3]
        %v1863 = vunpack.c.l.b16 %v1352
        %v1864 = vunpack.c.l.b16 %v1362
        %v1865 = vpack.c.b16 %v1864, %v1863
        %v1867 = vsel %vm336, %v1865, 0
        %v1870 = vsel %vm385, %v1862, 0
        %1872 = vmatprep.subr.bf16.mxu0 0
        %1873 = vmatpush1.bf16.msra.mxu0 %v1870
        %1874 = vmatprep.subr.bf16.mxu0 0
        %1875 = vmatpush1.bf16.msra.mxu0 0
        %1876 = vmatprep.subr.bf16.mxu0 0
        %1877 = vmatpush1.bf16.msra.mxu0 0
        %1878 = vmatprep.subr.bf16.mxu0 0
        %1879 = vmatpush1.bf16.msra.mxu0 0
        %1880 = vmatprep.subr.bf16.mxu0 0
        %1881 = vmatpush1.bf16.msra.mxu0 0
        %1882 = vmatprep.subr.bf16.mxu0 0
        %1883 = vmatpush1.bf16.msra.mxu0 0
        %1884 = vmatprep.subr.bf16.mxu0 0
        %1885 = vmatpush1.bf16.msra.mxu0 0
        %1886 = vmatprep.subr.bf16.mxu0 0
        %1887 = vmatpush1.bf16.msra.mxu0 0
        %1888 = vmatprep.subr.bf16.mxu0 0
        %1889 = vmatpush1.bf16.msra.mxu0 0
        %1890 = vmatprep.subr.bf16.mxu0 0
        %1891 = vmatpush1.bf16.msra.mxu0 0
        %1892 = vmatprep.subr.bf16.mxu0 0
        %1893 = vmatpush1.bf16.msra.mxu0 0
        %1894 = vmatprep.subr.bf16.mxu0 0
        %1895 = vmatpush1.bf16.msra.mxu0 0
        %1896 = vmatprep.subr.bf16.mxu0 0
        %1897 = vmatpush1.bf16.msra.mxu0 0
        %1898 = vmatprep.subr.bf16.mxu0 0
        %1899 = vmatpush1.bf16.msra.mxu0 0
        %1900 = vmatprep.subr.bf16.mxu0 0
        %1901 = vmatpush1.bf16.msra.mxu0 0
        %1902 = vmatprep.subr.bf16.mxu0 0
        %1903 = vmatpush1.bf16.msra.mxu0 0
        %1904 = vmatprep.mubr.bf16.mxu0 0
        %1905 = vmatmul.mubr.bf16.gmra.mrb[0].mxu0 %v1420
        %v1906 = vpop.f32.mrb[0].mxu0
        %v1907 = vadd.f32 0.0, %v1906
        %v1908 = vpop.f32.mrb[0].mxu0
        %v1909 = vpop.f32.mrb[0].mxu0
        %v1910 = vadd.f32 0.0, %v1909
        %v1911 = vpop.f32.mrb[0].mxu0
        %1912 = vmatprep.mubr.bf16.mxu0 0
        %1913 = vmatmul.mubr.bf16.gmra.mrb[0].mxu0 %v1423
        %v1914 = vpop.f32.mrb[0].mxu0
        %v1915 = vadd.f32 0.0, %v1914
        %v1916 = vpop.f32.mrb[0].mxu0
        %v1917 = vpop.f32.mrb[0].mxu0
        %v1918 = vadd.f32 0.0, %v1917
        %v1919 = vpop.f32.mrb[0].mxu0
        %1920 = vmatprep.mubr.bf16.mxu0 0
        %1921 = vmatmul.mubr.bf16.gmra.mrb[0].mxu0 %v1426
        %v1922 = vpop.f32.mrb[0].mxu0
        %v1923 = vadd.f32 0.0, %v1922
        %v1924 = vpop.f32.mrb[0].mxu0
        %v1925 = vpop.f32.mrb[0].mxu0
        %v1926 = vadd.f32 0.0, %v1925
        %v1927 = vpop.f32.mrb[0].mxu0
        %1928 = vmatprep.mubr.bf16.mxu0 0
        %1929 = vmatmul.mubr.bf16.gmra.mrb[0].mxu0 %v1429
        %v1930 = vpop.f32.mrb[0].mxu0
        %v1931 = vadd.f32 0.0, %v1930
        %v1932 = vpop.f32.mrb[0].mxu0
        %v1933 = vpop.f32.mrb[0].mxu0
        %v1934 = vadd.f32 0.0, %v1933
        %v1935 = vpop.f32.mrb[0].mxu0
        %1936 = vmatprep.mubr.bf16.mxu0 0
        %1937 = vmatmul.mubr.bf16.gmra.mrb[0].mxu0 %v1432
        %v1938 = vpop.f32.mrb[0].mxu0
        %v1939 = vadd.f32 0.0, %v1938
        %v1940 = vpop.f32.mrb[0].mxu0
        %v1941 = vpop.f32.mrb[0].mxu0
        %v1942 = vadd.f32 0.0, %v1941
        %v1943 = vpop.f32.mrb[0].mxu0
        %1944 = vmatprep.mubr.bf16.mxu0 0
        %1945 = vmatmul.mubr.bf16.gmra.mrb[0].mxu0 %v1435
        %v1946 = vpop.f32.mrb[0].mxu0
        %v1947 = vadd.f32 0.0, %v1946
        %v1948 = vpop.f32.mrb[0].mxu0
        %v1949 = vpop.f32.mrb[0].mxu0
        %v1950 = vadd.f32 0.0, %v1949
        %v1951 = vpop.f32.mrb[0].mxu0
        %1952 = vmatprep.mubr.bf16.mxu0 0
        %1953 = vmatmul.mubr.bf16.gmra.mrb[0].mxu0 %v1438
        %v1954 = vpop.f32.mrb[0].mxu0
        %v1955 = vadd.f32 0.0, %v1954
        %v1956 = vpop.f32.mrb[0].mxu0
        %v1957 = vpop.f32.mrb[0].mxu0
        %v1958 = vadd.f32 0.0, %v1957
        %v1959 = vpop.f32.mrb[0].mxu0
        %1960 = vmatprep.mubr.bf16.mxu0 0
        %1961 = vmatmul.mubr.bf16.gmra.mrb[0].mxu0 %v1441
        %v1962 = vpop.f32.mrb[0].mxu0
        %v1963 = vadd.f32 0.0, %v1962
        %v1964 = vpop.f32.mrb[0].mxu0
        %v1965 = vpop.f32.mrb[0].mxu0
        %v1966 = vadd.f32 0.0, %v1965
        %v1967 = vpop.f32.mrb[0].mxu0
        %1968 = vmatprep.mubr.bf16.mxu0 0
        %1969 = vmatmul.mubr.bf16.gmra.mrb[0].mxu0 %v1444
        %v1970 = vpop.f32.mrb[0].mxu0
        %v1971 = vadd.f32 0.0, %v1970
        %v1972 = vpop.f32.mrb[0].mxu0
        %v1973 = vpop.f32.mrb[0].mxu0
        %v1974 = vadd.f32 0.0, %v1973
        %v1975 = vpop.f32.mrb[0].mxu0
        %1976 = vmatprep.mubr.bf16.mxu0 0
        %1977 = vmatmul.mubr.bf16.gmra.mrb[0].mxu0 %v1447
        %v1978 = vpop.f32.mrb[0].mxu0
        %v1979 = vadd.f32 0.0, %v1978
        %v1980 = vpop.f32.mrb[0].mxu0
        %v1981 = vpop.f32.mrb[0].mxu0
        %v1982 = vadd.f32 0.0, %v1981
        %v1983 = vpop.f32.mrb[0].mxu0
        %1984 = vmatprep.mubr.bf16.mxu0 0
        %1985 = vmatmul.mubr.bf16.gmra.mrb[0].mxu0 %v1450
        %v1986 = vpop.f32.mrb[0].mxu0
        %v1987 = vadd.f32 0.0, %v1986
        %v1988 = vpop.f32.mrb[0].mxu0
        %v1989 = vpop.f32.mrb[0].mxu0
        %v1990 = vadd.f32 0.0, %v1989
        %v1991 = vpop.f32.mrb[0].mxu0
        %1992 = vmatprep.mubr.bf16.mxu0 0
        %1993 = vmatmul.mubr.bf16.gmra.mrb[0].mxu0 %v1453
        %v1994 = vpop.f32.mrb[0].mxu0
        %v1995 = vadd.f32 0.0, %v1994
        %v1996 = vpop.f32.mrb[0].mxu0
        %v1997 = vpop.f32.mrb[0].mxu0
        %v1998 = vadd.f32 0.0, %v1997
        %v1999 = vpop.f32.mrb[0].mxu0
        %2000 = vmatprep.mubr.bf16.mxu0 0
        %2001 = vmatmul.mubr.bf16.gmra.mrb[0].mxu0 %v1456
        %v2002 = vpop.f32.mrb[0].mxu0
        %v2003 = vadd.f32 0.0, %v2002
        %v2004 = vpop.f32.mrb[0].mxu0
        %v2005 = vpop.f32.mrb[0].mxu0
        %v2006 = vadd.f32 0.0, %v2005
        %v2007 = vpop.f32.mrb[0].mxu0
        %2008 = vmatprep.mubr.bf16.mxu0 0
        %2009 = vmatmul.mubr.bf16.gmra.mrb[0].mxu0 %v1459
        %v2010 = vpop.f32.mrb[0].mxu0
        %v2011 = vadd.f32 0.0, %v2010
        %v2012 = vpop.f32.mrb[0].mxu0
        %v2013 = vpop.f32.mrb[0].mxu0
        %v2014 = vadd.f32 0.0, %v2013
        %v2015 = vpop.f32.mrb[0].mxu0
        %2016 = vmatprep.mubr.bf16.mxu0 0
        %2017 = vmatmul.mubr.bf16.gmra.mrb[0].mxu0 %v1663
        %v2018 = vpop.f32.mrb[0].mxu0
        %v2019 = vadd.f32 0.0, %v2018
        %v2020 = vpop.f32.mrb[0].mxu0
        %v2021 = vpop.f32.mrb[0].mxu0
        %v2022 = vadd.f32 0.0, %v2021
        %v2023 = vpop.f32.mrb[0].mxu0
        %2024 = vmatprep.mubr.bf16.mxu0 0
        %2025 = vmatmul.mubr.bf16.gmra.mrb[0].mxu0 %v1867
        %v2026 = vpop.f32.mrb[0].mxu0
        %v2027 = vadd.f32 0.0, %v2026
        %v2028 = vpop.f32.mrb[0].mxu0
        %v2029 = vpop.f32.mrb[0].mxu0
        %v2030 = vadd.f32 0.0, %v2029
        %v2031 = vpop.f32.mrb[0].mxu0
        %2032 = vdwg.mxu0
        %v2033 = vadd.f32 %v1829, %v1907
        %v2034 = vadd.f32 %v1830, %v1910
        %v2035 = vadd.f32 %v1831, %v1915
        %v2036 = vadd.f32 %v1832, %v1918
        %v2037 = vadd.f32 %v1833, %v1923
        %v2038 = vadd.f32 %v1834, %v1926
        %v2039 = vadd.f32 %v1835, %v1931
        %v2040 = vadd.f32 %v1836, %v1934
        %v2041 = vadd.f32 %v1837, %v1939
        %v2042 = vadd.f32 %v1838, %v1942
        %v2043 = vadd.f32 %v1839, %v1947
        %v2044 = vadd.f32 %v1840, %v1950
        %v2045 = vadd.f32 %v1841, %v1955
        %v2046 = vadd.f32 %v1842, %v1958
        %v2047 = vadd.f32 %v1843, %v1963
        %v2048 = vadd.f32 %v1844, %v1966
        %v2049 = vadd.f32 %v1845, %v1971
        %v2050 = vadd.f32 %v1846, %v1974
        %v2051 = vadd.f32 %v1847, %v1979
        %v2052 = vadd.f32 %v1848, %v1982
        %v2053 = vadd.f32 %v1849, %v1987
        %v2054 = vadd.f32 %v1850, %v1990
        %v2055 = vadd.f32 %v1851, %v1995
        %v2056 = vadd.f32 %v1852, %v1998
        %v2057 = vadd.f32 %v1853, %v2003
        %v2058 = vadd.f32 %v1854, %v2006
        %v2059 = vadd.f32 %v1855, %v2011
        %v2060 = vadd.f32 %v1856, %v2014
        %v2061 = vadd.f32 %v1857, %v2019
        %v2062 = vadd.f32 %v1858, %v2022
        %v2063 = vadd.f32 %v1859, %v2027
        %v2064 = vadd.f32 %v1860, %v2030
        %vm2083 = vcmask 1042432
        %vm2084 = vcmask 1046532
        %vm2085 = vmor %vm2083, %vm2084
        %v2086 = vrot.slane %v199, 5
        %v2087 = vrot.slane %v2086, 4
        %v2088 = vrot.slane %v200, 5
        %v2089 = vsel %vm2085, %v2087, %v2088
        %v2090 = vrot.slane %v2088, 4
        %v2091 = vrot.slane %v201, 5
        %v2092 = vsel %vm2085, %v2090, %v2091
        %v2093 = vrot.slane %v202, 5
        %v2094 = vrot.slane %v2093, 4
        %v2095 = vrot.slane %v203, 5
        %v2096 = vsel %vm2085, %v2094, %v2095
        %v2097 = vrot.slane %v2095, 4
        %v2098 = vrot.slane %v204, 5
        %v2099 = vsel %vm2085, %v2097, %v2098
        %v2100 = vrot.slane %v205, 5
        %v2101 = vrot.slane %v2100, 4
        %v2102 = vrot.slane %v206, 5
        %v2103 = vsel %vm2085, %v2101, %v2102
        %v2104 = vrot.slane %v2102, 4
        %v2105 = vrot.slane %v207, 5
        %v2106 = vsel %vm2085, %v2104, %v2105
        %v2107 = vrot.slane %v208, 5
        %v2108 = vrot.slane %v2107, 4
        %v2109 = vrot.slane %v209, 5
        %v2110 = vsel %vm2085, %v2108, %v2109
        %v2111 = vrot.slane %v2109, 4
        %v2112 = vrot.slane %v210, 5
        %v2113 = vsel %vm2085, %v2111, %v2112
        %v2114 = vrot.slane %v211, 5
        %v2115 = vrot.slane %v2114, 4
        %v2116 = vrot.slane %v212, 5
        %v2117 = vsel %vm2085, %v2115, %v2116
        %v2118 = vrot.slane %v2116, 4
        %v2119 = vrot.slane %v213, 5
        %v2120 = vsel %vm2085, %v2118, %v2119
        %v2121 = vrot.slane %v214, 5
        %v2122 = vrot.slane %v2121, 4
        %v2123 = vrot.slane %v215, 5
        %v2124 = vsel %vm2085, %v2122, %v2123
        %v2125 = vrot.slane %v2123, 4
        %v2126 = vrot.slane %v216, 5
        %v2127 = vsel %vm2085, %v2125, %v2126
        %v2128 = vrot.slane %v217, 5
        %v2129 = vrot.slane %v2128, 4
        %v2130 = vrot.slane %v218, 5
        %v2131 = vsel %vm2085, %v2129, %v2130
        %v2132 = vrot.slane %v2130, 4
        %v2133 = vrot.slane %v219, 5
        %v2134 = vsel %vm2085, %v2132, %v2133
        %v2135 = vrot.slane %v220, 5
        %v2136 = vrot.slane %v2135, 4
        %v2137 = vrot.slane %v221, 5
        %v2138 = vsel %vm2085, %v2136, %v2137
        %v2139 = vrot.slane %v2137, 4
        %v2140 = vrot.slane %v222, 5
        %v2141 = vsel %vm2085, %v2139, %v2140
        %v2142 = vrot.slane %v223, 5
        %v2143 = vrot.slane %v2142, 4
        %v2144 = vrot.slane %v224, 5
        %v2145 = vsel %vm2085, %v2143, %v2144
        %v2146 = vrot.slane %v2144, 4
        %v2147 = vrot.slane %v225, 5
        %v2148 = vsel %vm2085, %v2146, %v2147
        %v2149 = vrot.slane %v226, 5
        %v2150 = vrot.slane %v2149, 4
        %v2151 = vrot.slane %v227, 5
        %v2152 = vsel %vm2085, %v2150, %v2151
        %v2153 = vrot.slane %v2151, 4
        %v2154 = vrot.slane %v228, 5
        %v2155 = vsel %vm2085, %v2153, %v2154
        %v2156 = vrot.slane %v229, 5
        %v2157 = vrot.slane %v2156, 4
        %v2158 = vrot.slane %v230, 5
        %v2159 = vsel %vm2085, %v2157, %v2158
        %v2160 = vrot.slane %v2158, 4
        %v2161 = vrot.slane %v231, 5
        %v2162 = vsel %vm2085, %v2160, %v2161
        %v2163 = vrot.slane %v232, 5
        %v2164 = vrot.slane %v2163, 4
        %v2165 = vrot.slane %v233, 5
        %v2166 = vsel %vm2085, %v2164, %v2165
        %v2167 = vrot.slane %v2165, 4
        %v2168 = vrot.slane %v234, 5
        %v2169 = vsel %vm2085, %v2167, %v2168
        %v2170 = vrot.slane %v235, 5
        %v2171 = vrot.slane %v2170, 4
        %v2172 = vrot.slane %v236, 5
        %v2173 = vsel %vm2085, %v2171, %v2172
        %v2174 = vrot.slane %v2172, 4
        %v2175 = vrot.slane %v237, 5
        %v2176 = vsel %vm2085, %v2174, %v2175
        %v2177 = vrot.slane %v238, 5
        %v2178 = vrot.slane %v2177, 4
        %v2179 = vrot.slane %v239, 5
        %v2180 = vsel %vm2085, %v2178, %v2179
        %v2181 = vrot.slane %v2179, 4
        %v2182 = vrot.slane %v240, 5
        %v2183 = vsel %vm2085, %v2181, %v2182
        %v2184 = vrot.slane %v241, 5
        %v2185 = vrot.slane %v2184, 4
        %v2186 = vrot.slane %v242, 5
        %v2187 = vsel %vm2085, %v2185, %v2186
        %v2188 = vrot.slane %v2186, 4
        %v2189 = vrot.slane %v243, 5
        %v2190 = vsel %vm2085, %v2188, %v2189
        %v2191 = vrot.slane %v244, 5
        %v2192 = vrot.slane %v2191, 4
        %v2193 = vrot.slane %v245, 5
        %v2194 = vsel %vm2085, %v2192, %v2193
        %v2195 = vrot.slane %v2193, 4
        %v2196 = vrot.slane %v246, 5
        %v2197 = vsel %vm2085, %v2195, %v2196
        %v2198 = vrot.slane %v247, 5
        %v2199 = vrot.slane %v2198, 4
        %v2200 = vrot.slane %v248, 5
        %v2201 = vsel %vm2085, %v2199, %v2200
        %v2202 = vrot.slane %v2200, 4
        %v2203 = vrot.slane %v249, 5
        %v2204 = vsel %vm2085, %v2202, %v2203
        %v2205 = vrot.slane %v250, 5
        %v2206 = vrot.slane %v2205, 4
        %v2207 = vrot.slane %v251, 5
        %v2208 = vsel %vm2085, %v2206, %v2207
        %v2209 = vrot.slane %v2207, 4
        %v2210 = vrot.slane %v252, 5
        %v2211 = vsel %vm2085, %v2209, %v2210
        %s2212 = scalar_lea.vmem %s1, 4
        %v2213 = vld [vmem:[%s2212] sm:$0x3]
        %v2214 = vunpack.c.l.b16 %v2089
        %v2215 = vunpack.c.l.b16 %v2092
        %v2216 = vunpack.c.l.b16 %v2096
        %v2217 = vunpack.c.l.b16 %v2099
        %v2218 = vunpack.c.l.b16 %v2103
        %v2219 = vunpack.c.l.b16 %v2106
        %v2220 = vunpack.c.l.b16 %v2110
        %v2221 = vunpack.c.l.b16 %v2113
        %v2222 = vunpack.c.l.b16 %v2117
        %v2223 = vunpack.c.l.b16 %v2120
        %v2224 = vunpack.c.l.b16 %v2124
        %v2225 = vunpack.c.l.b16 %v2127
        %v2226 = vunpack.c.l.b16 %v2131
        %v2227 = vunpack.c.l.b16 %v2134
        %v2228 = vunpack.c.l.b16 %v2138
        %v2229 = vunpack.c.l.b16 %v2141
        %v2230 = vunpack.c.l.b16 %v2145
        %v2231 = vunpack.c.l.b16 %v2148
        %v2232 = vunpack.c.l.b16 %v2152
        %v2233 = vunpack.c.l.b16 %v2155
        %v2234 = vunpack.c.l.b16 %v2159
        %v2235 = vunpack.c.l.b16 %v2162
        %v2236 = vunpack.c.l.b16 %v2166
        %v2237 = vunpack.c.l.b16 %v2169
        %v2238 = vunpack.c.l.b16 %v2173
        %v2239 = vunpack.c.l.b16 %v2176
        %v2240 = vunpack.c.l.b16 %v2180
        %v2241 = vunpack.c.l.b16 %v2183
        %v2242 = vunpack.c.l.b16 %v2187
        %v2243 = vunpack.c.l.b16 %v2190
        %v2244 = vunpack.c.l.b16 %v2194
        %v2245 = vunpack.c.l.b16 %v2197
        %v2246 = vpack.c.b16 %v2215, %v2214
        %v2247 = vpack.c.b16 %v2217, %v2216
        %v2248 = vpack.c.b16 %v2219, %v2218
        %v2249 = vpack.c.b16 %v2221, %v2220
        %v2250 = vpack.c.b16 %v2223, %v2222
        %v2251 = vpack.c.b16 %v2225, %v2224
        %v2252 = vpack.c.b16 %v2227, %v2226
        %v2253 = vpack.c.b16 %v2229, %v2228
        %v2254 = vpack.c.b16 %v2231, %v2230
        %v2255 = vpack.c.b16 %v2233, %v2232
        %v2256 = vpack.c.b16 %v2235, %v2234
        %v2257 = vpack.c.b16 %v2237, %v2236
        %v2258 = vpack.c.b16 %v2239, %v2238
        %v2259 = vpack.c.b16 %v2241, %v2240
        %v2260 = vpack.c.b16 %v2243, %v2242
        %v2261 = vpack.c.b16 %v2245, %v2244
        %v2263 = vsel %vm336, %v2246, 0
        %v2266 = vsel %vm336, %v2247, 0
        %v2269 = vsel %vm336, %v2248, 0
        %v2272 = vsel %vm336, %v2249, 0
        %v2275 = vsel %vm336, %v2250, 0
        %v2278 = vsel %vm336, %v2251, 0
        %v2281 = vsel %vm336, %v2252, 0
        %v2284 = vsel %vm336, %v2253, 0
        %v2287 = vsel %vm336, %v2254, 0
        %v2290 = vsel %vm336, %v2255, 0
        %v2293 = vsel %vm336, %v2256, 0
        %v2296 = vsel %vm336, %v2257, 0
        %v2299 = vsel %vm336, %v2258, 0
        %v2302 = vsel %vm336, %v2259, 0
        %v2305 = vsel %vm336, %v2260, 0
        %v2308 = vsel %vm336, %v2261, 0
        %v2311 = vsel %vm385, %v2213, 0
        %2313 = vmatprep.subr.bf16.mxu0 0
        %2314 = vmatpush1.bf16.msra.mxu0 %v2311
        %2315 = vmatprep.subr.bf16.mxu0 0
        %2316 = vmatpush1.bf16.msra.mxu0 0
        %2317 = vmatprep.subr.bf16.mxu0 0
        %2318 = vmatpush1.bf16.msra.mxu0 0
        %2319 = vmatprep.subr.bf16.mxu0 0
        %2320 = vmatpush1.bf16.msra.mxu0 0
        %2321 = vmatprep.subr.bf16.mxu0 0
        %2322 = vmatpush1.bf16.msra.mxu0 0
        %2323 = vmatprep.subr.bf16.mxu0 0
        %2324 = vmatpush1.bf16.msra.mxu0 0
        %2325 = vmatprep.subr.bf16.mxu0 0
        %2326 = vmatpush1.bf16.msra.mxu0 0
        %2327 = vmatprep.subr.bf16.mxu0 0
        %2328 = vmatpush1.bf16.msra.mxu0 0
        %2329 = vmatprep.subr.bf16.mxu0 0
        %2330 = vmatpush1.bf16.msra.mxu0 0
        %2331 = vmatprep.subr.bf16.mxu0 0
        %2332 = vmatpush1.bf16.msra.mxu0 0
        %2333 = vmatprep.subr.bf16.mxu0 0
        %2334 = vmatpush1.bf16.msra.mxu0 0
        %2335 = vmatprep.subr.bf16.mxu0 0
        %2336 = vmatpush1.bf16.msra.mxu0 0
        %2337 = vmatprep.subr.bf16.mxu0 0
        %2338 = vmatpush1.bf16.msra.mxu0 0
        %2339 = vmatprep.subr.bf16.mxu0 0
        %2340 = vmatpush1.bf16.msra.mxu0 0
        %2341 = vmatprep.subr.bf16.mxu0 0
        %2342 = vmatpush1.bf16.msra.mxu0 0
        %2343 = vmatprep.subr.bf16.mxu0 0
        %2344 = vmatpush1.bf16.msra.mxu0 0
        %2345 = vmatprep.mubr.bf16.mxu0 0
        %2346 = vmatmul.mubr.bf16.gmra.mrb[0].mxu0 %v2263
        %v2347 = vpop.f32.mrb[0].mxu0
        %v2348 = vadd.f32 0.0, %v2347
        %v2349 = vpop.f32.mrb[0].mxu0
        %v2350 = vpop.f32.mrb[0].mxu0
        %v2351 = vadd.f32 0.0, %v2350
        %v2352 = vpop.f32.mrb[0].mxu0
        %2353 = vmatprep.mubr.bf16.mxu0 0
        %2354 = vmatmul.mubr.bf16.gmra.mrb[0].mxu0 %v2266
        %v2355 = vpop.f32.mrb[0].mxu0
        %v2356 = vadd.f32 0.0, %v2355
        %v2357 = vpop.f32.mrb[0].mxu0
        %v2358 = vpop.f32.mrb[0].mxu0
        %v2359 = vadd.f32 0.0, %v2358
        %v2360 = vpop.f32.mrb[0].mxu0
        %2361 = vmatprep.mubr.bf16.mxu0 0
        %2362 = vmatmul.mubr.bf16.gmra.mrb[0].mxu0 %v2269
        %v2363 = vpop.f32.mrb[0].mxu0
        %v2364 = vadd.f32 0.0, %v2363
        %v2365 = vpop.f32.mrb[0].mxu0
        %v2366 = vpop.f32.mrb[0].mxu0
        %v2367 = vadd.f32 0.0, %v2366
        %v2368 = vpop.f32.mrb[0].mxu0
        %2369 = vmatprep.mubr.bf16.mxu0 0
        %2370 = vmatmul.mubr.bf16.gmra.mrb[0].mxu0 %v2272
        %v2371 = vpop.f32.mrb[0].mxu0
        %v2372 = vadd.f32 0.0, %v2371
        %v2373 = vpop.f32.mrb[0].mxu0
        %v2374 = vpop.f32.mrb[0].mxu0
        %v2375 = vadd.f32 0.0, %v2374
        %v2376 = vpop.f32.mrb[0].mxu0
        %2377 = vmatprep.mubr.bf16.mxu0 0
        %2378 = vmatmul.mubr.bf16.gmra.mrb[0].mxu0 %v2275
        %v2379 = vpop.f32.mrb[0].mxu0
        %v2380 = vadd.f32 0.0, %v2379
        %v2381 = vpop.f32.mrb[0].mxu0
        %v2382 = vpop.f32.mrb[0].mxu0
        %v2383 = vadd.f32 0.0, %v2382
        %v2384 = vpop.f32.mrb[0].mxu0
        %2385 = vmatprep.mubr.bf16.mxu0 0
        %2386 = vmatmul.mubr.bf16.gmra.mrb[0].mxu0 %v2278
        %v2387 = vpop.f32.mrb[0].mxu0
        %v2388 = vadd.f32 0.0, %v2387
        %v2389 = vpop.f32.mrb[0].mxu0
        %v2390 = vpop.f32.mrb[0].mxu0
        %v2391 = vadd.f32 0.0, %v2390
        %v2392 = vpop.f32.mrb[0].mxu0
        %2393 = vmatprep.mubr.bf16.mxu0 0
        %2394 = vmatmul.mubr.bf16.gmra.mrb[0].mxu0 %v2281
        %v2395 = vpop.f32.mrb[0].mxu0
        %v2396 = vadd.f32 0.0, %v2395
        %v2397 = vpop.f32.mrb[0].mxu0
        %v2398 = vpop.f32.mrb[0].mxu0
        %v2399 = vadd.f32 0.0, %v2398
        %v2400 = vpop.f32.mrb[0].mxu0
        %2401 = vmatprep.mubr.bf16.mxu0 0
        %2402 = vmatmul.mubr.bf16.gmra.mrb[0].mxu0 %v2284
        %v2403 = vpop.f32.mrb[0].mxu0
        %v2404 = vadd.f32 0.0, %v2403
        %v2405 = vpop.f32.mrb[0].mxu0
        %v2406 = vpop.f32.mrb[0].mxu0
        %v2407 = vadd.f32 0.0, %v2406
        %v2408 = vpop.f32.mrb[0].mxu0
        %2409 = vmatprep.mubr.bf16.mxu0 0
        %2410 = vmatmul.mubr.bf16.gmra.mrb[0].mxu0 %v2287
        %v2411 = vpop.f32.mrb[0].mxu0
        %v2412 = vadd.f32 0.0, %v2411
        %v2413 = vpop.f32.mrb[0].mxu0
        %v2414 = vpop.f32.mrb[0].mxu0
        %v2415 = vadd.f32 0.0, %v2414
        %v2416 = vpop.f32.mrb[0].mxu0
        %2417 = vmatprep.mubr.bf16.mxu0 0
        %2418 = vmatmul.mubr.bf16.gmra.mrb[0].mxu0 %v2290
        %v2419 = vpop.f32.mrb[0].mxu0
        %v2420 = vadd.f32 0.0, %v2419
        %v2421 = vpop.f32.mrb[0].mxu0
        %v2422 = vpop.f32.mrb[0].mxu0
        %v2423 = vadd.f32 0.0, %v2422
        %v2424 = vpop.f32.mrb[0].mxu0
        %2425 = vmatprep.mubr.bf16.mxu0 0
        %2426 = vmatmul.mubr.bf16.gmra.mrb[0].mxu0 %v2293
        %v2427 = vpop.f32.mrb[0].mxu0
        %v2428 = vadd.f32 0.0, %v2427
        %v2429 = vpop.f32.mrb[0].mxu0
        %v2430 = vpop.f32.mrb[0].mxu0
        %v2431 = vadd.f32 0.0, %v2430
        %v2432 = vpop.f32.mrb[0].mxu0
        %2433 = vmatprep.mubr.bf16.mxu0 0
        %2434 = vmatmul.mubr.bf16.gmra.mrb[0].mxu0 %v2296
        %v2435 = vpop.f32.mrb[0].mxu0
        %v2436 = vadd.f32 0.0, %v2435
        %v2437 = vpop.f32.mrb[0].mxu0
        %v2438 = vpop.f32.mrb[0].mxu0
        %v2439 = vadd.f32 0.0, %v2438
        %v2440 = vpop.f32.mrb[0].mxu0
        %2441 = vmatprep.mubr.bf16.mxu0 0
        %2442 = vmatmul.mubr.bf16.gmra.mrb[0].mxu0 %v2299
        %v2443 = vpop.f32.mrb[0].mxu0
        %v2444 = vadd.f32 0.0, %v2443
        %v2445 = vpop.f32.mrb[0].mxu0
        %v2446 = vpop.f32.mrb[0].mxu0
        %v2447 = vadd.f32 0.0, %v2446
        %v2448 = vpop.f32.mrb[0].mxu0
        %2449 = vmatprep.mubr.bf16.mxu0 0
        %2450 = vmatmul.mubr.bf16.gmra.mrb[0].mxu0 %v2302
        %v2451 = vpop.f32.mrb[0].mxu0
        %v2452 = vadd.f32 0.0, %v2451
        %v2453 = vpop.f32.mrb[0].mxu0
        %v2454 = vpop.f32.mrb[0].mxu0
        %v2455 = vadd.f32 0.0, %v2454
        %v2456 = vpop.f32.mrb[0].mxu0
        %2457 = vmatprep.mubr.bf16.mxu0 0
        %2458 = vmatmul.mubr.bf16.gmra.mrb[0].mxu0 %v2305
        %v2459 = vpop.f32.mrb[0].mxu0
        %v2460 = vadd.f32 0.0, %v2459
        %v2461 = vpop.f32.mrb[0].mxu0
        %v2462 = vpop.f32.mrb[0].mxu0
        %v2463 = vadd.f32 0.0, %v2462
        %v2464 = vpop.f32.mrb[0].mxu0
        %2465 = vmatprep.mubr.bf16.mxu0 0
        %2466 = vmatmul.mubr.bf16.gmra.mrb[0].mxu0 %v2308
        %v2467 = vpop.f32.mrb[0].mxu0
        %v2468 = vadd.f32 0.0, %v2467
        %v2469 = vpop.f32.mrb[0].mxu0
        %v2470 = vpop.f32.mrb[0].mxu0
        %v2471 = vadd.f32 0.0, %v2470
        %v2472 = vpop.f32.mrb[0].mxu0
        %2473 = vdwg.mxu0
        %v2474 = vadd.f32 %v2033, %v2348
        %v2475 = vadd.f32 %v2034, %v2351
        %v2476 = vadd.f32 %v2035, %v2356
        %v2477 = vadd.f32 %v2036, %v2359
        %v2478 = vadd.f32 %v2037, %v2364
        %v2479 = vadd.f32 %v2038, %v2367
        %v2480 = vadd.f32 %v2039, %v2372
        %v2481 = vadd.f32 %v2040, %v2375
        %v2482 = vadd.f32 %v2041, %v2380
        %v2483 = vadd.f32 %v2042, %v2383
        %v2484 = vadd.f32 %v2043, %v2388
        %v2485 = vadd.f32 %v2044, %v2391
        %v2486 = vadd.f32 %v2045, %v2396
        %v2487 = vadd.f32 %v2046, %v2399
        %v2488 = vadd.f32 %v2047, %v2404
        %v2489 = vadd.f32 %v2048, %v2407
        %v2490 = vadd.f32 %v2049, %v2412
        %v2491 = vadd.f32 %v2050, %v2415
        %v2492 = vadd.f32 %v2051, %v2420
        %v2493 = vadd.f32 %v2052, %v2423
        %v2494 = vadd.f32 %v2053, %v2428
        %v2495 = vadd.f32 %v2054, %v2431
        %v2496 = vadd.f32 %v2055, %v2436
        %v2497 = vadd.f32 %v2056, %v2439
        %v2498 = vadd.f32 %v2057, %v2444
        %v2499 = vadd.f32 %v2058, %v2447
        %v2500 = vadd.f32 %v2059, %v2452
        %v2501 = vadd.f32 %v2060, %v2455
        %v2502 = vadd.f32 %v2061, %v2460
        %v2503 = vadd.f32 %v2062, %v2463
        %v2504 = vadd.f32 %v2063, %v2468
        %v2505 = vadd.f32 %v2064, %v2471
        %s2506 = scalar_lea.vmem %s1, 10
        %v2507 = vld [vmem:[%s2506] sm:$0x3]
        %v2508 = vunpack.c.l.b16 %v2201
        %v2509 = vunpack.c.l.b16 %v2204
        %v2510 = vpack.c.b16 %v2509, %v2508
        %v2512 = vsel %vm336, %v2510, 0
        %v2515 = vsel %vm385, %v2507, 0
        %2517 = vmatprep.subr.bf16.mxu0 0
        %2518 = vmatpush1.bf16.msra.mxu0 %v2515
        %2519 = vmatprep.subr.bf16.mxu0 0
        %2520 = vmatpush1.bf16.msra.mxu0 0
        %2521 = vmatprep.subr.bf16.mxu0 0
        %2522 = vmatpush1.bf16.msra.mxu0 0
        %2523 = vmatprep.subr.bf16.mxu0 0
        %2524 = vmatpush1.bf16.msra.mxu0 0
        %2525 = vmatprep.subr.bf16.mxu0 0
        %2526 = vmatpush1.bf16.msra.mxu0 0
        %2527 = vmatprep.subr.bf16.mxu0 0
        %2528 = vmatpush1.bf16.msra.mxu0 0
        %2529 = vmatprep.subr.bf16.mxu0 0
        %2530 = vmatpush1.bf16.msra.mxu0 0
        %2531 = vmatprep.subr.bf16.mxu0 0
        %2532 = vmatpush1.bf16.msra.mxu0 0
        %2533 = vmatprep.subr.bf16.mxu0 0
        %2534 = vmatpush1.bf16.msra.mxu0 0
        %2535 = vmatprep.subr.bf16.mxu0 0
        %2536 = vmatpush1.bf16.msra.mxu0 0
        %2537 = vmatprep.subr.bf16.mxu0 0
        %2538 = vmatpush1.bf16.msra.mxu0 0
        %2539 = vmatprep.subr.bf16.mxu0 0
        %2540 = vmatpush1.bf16.msra.mxu0 0
        %2541 = vmatprep.subr.bf16.mxu0 0
        %2542 = vmatpush1.bf16.msra.mxu0 0
        %2543 = vmatprep.subr.bf16.mxu0 0
        %2544 = vmatpush1.bf16.msra.mxu0 0
        %2545 = vmatprep.subr.bf16.mxu0 0
        %2546 = vmatpush1.bf16.msra.mxu0 0
        %2547 = vmatprep.subr.bf16.mxu0 0
        %2548 = vmatpush1.bf16.msra.mxu0 0
        %2549 = vmatprep.mubr.bf16.mxu0 0
        %2550 = vmatmul.mubr.bf16.gmra.mrb[0].mxu0 %v2266
        %v2551 = vpop.f32.mrb[0].mxu0
        %v2552 = vadd.f32 0.0, %v2551
        %v2553 = vpop.f32.mrb[0].mxu0
        %v2554 = vpop.f32.mrb[0].mxu0
        %v2555 = vadd.f32 0.0, %v2554
        %v2556 = vpop.f32.mrb[0].mxu0
        %2557 = vmatprep.mubr.bf16.mxu0 0
        %2558 = vmatmul.mubr.bf16.gmra.mrb[0].mxu0 %v2269
        %v2559 = vpop.f32.mrb[0].mxu0
        %v2560 = vadd.f32 0.0, %v2559
        %v2561 = vpop.f32.mrb[0].mxu0
        %v2562 = vpop.f32.mrb[0].mxu0
        %v2563 = vadd.f32 0.0, %v2562
        %v2564 = vpop.f32.mrb[0].mxu0
        %2565 = vmatprep.mubr.bf16.mxu0 0
        %2566 = vmatmul.mubr.bf16.gmra.mrb[0].mxu0 %v2272
        %v2567 = vpop.f32.mrb[0].mxu0
        %v2568 = vadd.f32 0.0, %v2567
        %v2569 = vpop.f32.mrb[0].mxu0
        %v2570 = vpop.f32.mrb[0].mxu0
        %v2571 = vadd.f32 0.0, %v2570
        %v2572 = vpop.f32.mrb[0].mxu0
        %2573 = vmatprep.mubr.bf16.mxu0 0
        %2574 = vmatmul.mubr.bf16.gmra.mrb[0].mxu0 %v2275
        %v2575 = vpop.f32.mrb[0].mxu0
        %v2576 = vadd.f32 0.0, %v2575
        %v2577 = vpop.f32.mrb[0].mxu0
        %v2578 = vpop.f32.mrb[0].mxu0
        %v2579 = vadd.f32 0.0, %v2578
        %v2580 = vpop.f32.mrb[0].mxu0
        %2581 = vmatprep.mubr.bf16.mxu0 0
        %2582 = vmatmul.mubr.bf16.gmra.mrb[0].mxu0 %v2278
        %v2583 = vpop.f32.mrb[0].mxu0
        %v2584 = vadd.f32 0.0, %v2583
        %v2585 = vpop.f32.mrb[0].mxu0
        %v2586 = vpop.f32.mrb[0].mxu0
        %v2587 = vadd.f32 0.0, %v2586
        %v2588 = vpop.f32.mrb[0].mxu0
        %2589 = vmatprep.mubr.bf16.mxu0 0
        %2590 = vmatmul.mubr.bf16.gmra.mrb[0].mxu0 %v2281
        %v2591 = vpop.f32.mrb[0].mxu0
        %v2592 = vadd.f32 0.0, %v2591
        %v2593 = vpop.f32.mrb[0].mxu0
        %v2594 = vpop.f32.mrb[0].mxu0
        %v2595 = vadd.f32 0.0, %v2594
        %v2596 = vpop.f32.mrb[0].mxu0
        %2597 = vmatprep.mubr.bf16.mxu0 0
        %2598 = vmatmul.mubr.bf16.gmra.mrb[0].mxu0 %v2284
        %v2599 = vpop.f32.mrb[0].mxu0
        %v2600 = vadd.f32 0.0, %v2599
        %v2601 = vpop.f32.mrb[0].mxu0
        %v2602 = vpop.f32.mrb[0].mxu0
        %v2603 = vadd.f32 0.0, %v2602
        %v2604 = vpop.f32.mrb[0].mxu0
        %2605 = vmatprep.mubr.bf16.mxu0 0
        %2606 = vmatmul.mubr.bf16.gmra.mrb[0].mxu0 %v2287
        %v2607 = vpop.f32.mrb[0].mxu0
        %v2608 = vadd.f32 0.0, %v2607
        %v2609 = vpop.f32.mrb[0].mxu0
        %v2610 = vpop.f32.mrb[0].mxu0
        %v2611 = vadd.f32 0.0, %v2610
        %v2612 = vpop.f32.mrb[0].mxu0
        %2613 = vmatprep.mubr.bf16.mxu0 0
        %2614 = vmatmul.mubr.bf16.gmra.mrb[0].mxu0 %v2290
        %v2615 = vpop.f32.mrb[0].mxu0
        %v2616 = vadd.f32 0.0, %v2615
        %v2617 = vpop.f32.mrb[0].mxu0
        %v2618 = vpop.f32.mrb[0].mxu0
        %v2619 = vadd.f32 0.0, %v2618
        %v2620 = vpop.f32.mrb[0].mxu0
        %2621 = vmatprep.mubr.bf16.mxu0 0
        %2622 = vmatmul.mubr.bf16.gmra.mrb[0].mxu0 %v2293
        %v2623 = vpop.f32.mrb[0].mxu0
        %v2624 = vadd.f32 0.0, %v2623
        %v2625 = vpop.f32.mrb[0].mxu0
        %v2626 = vpop.f32.mrb[0].mxu0
        %v2627 = vadd.f32 0.0, %v2626
        %v2628 = vpop.f32.mrb[0].mxu0
        %2629 = vmatprep.mubr.bf16.mxu0 0
        %2630 = vmatmul.mubr.bf16.gmra.mrb[0].mxu0 %v2296
        %v2631 = vpop.f32.mrb[0].mxu0
        %v2632 = vadd.f32 0.0, %v2631
        %v2633 = vpop.f32.mrb[0].mxu0
        %v2634 = vpop.f32.mrb[0].mxu0
        %v2635 = vadd.f32 0.0, %v2634
        %v2636 = vpop.f32.mrb[0].mxu0
        %2637 = vmatprep.mubr.bf16.mxu0 0
        %2638 = vmatmul.mubr.bf16.gmra.mrb[0].mxu0 %v2299
        %v2639 = vpop.f32.mrb[0].mxu0
        %v2640 = vadd.f32 0.0, %v2639
        %v2641 = vpop.f32.mrb[0].mxu0
        %v2642 = vpop.f32.mrb[0].mxu0
        %v2643 = vadd.f32 0.0, %v2642
        %v2644 = vpop.f32.mrb[0].mxu0
        %2645 = vmatprep.mubr.bf16.mxu0 0
        %2646 = vmatmul.mubr.bf16.gmra.mrb[0].mxu0 %v2302
        %v2647 = vpop.f32.mrb[0].mxu0
        %v2648 = vadd.f32 0.0, %v2647
        %v2649 = vpop.f32.mrb[0].mxu0
        %v2650 = vpop.f32.mrb[0].mxu0
        %v2651 = vadd.f32 0.0, %v2650
        %v2652 = vpop.f32.mrb[0].mxu0
        %2653 = vmatprep.mubr.bf16.mxu0 0
        %2654 = vmatmul.mubr.bf16.gmra.mrb[0].mxu0 %v2305
        %v2655 = vpop.f32.mrb[0].mxu0
        %v2656 = vadd.f32 0.0, %v2655
        %v2657 = vpop.f32.mrb[0].mxu0
        %v2658 = vpop.f32.mrb[0].mxu0
        %v2659 = vadd.f32 0.0, %v2658
        %v2660 = vpop.f32.mrb[0].mxu0
        %2661 = vmatprep.mubr.bf16.mxu0 0
        %2662 = vmatmul.mubr.bf16.gmra.mrb[0].mxu0 %v2308
        %v2663 = vpop.f32.mrb[0].mxu0
        %v2664 = vadd.f32 0.0, %v2663
        %v2665 = vpop.f32.mrb[0].mxu0
        %v2666 = vpop.f32.mrb[0].mxu0
        %v2667 = vadd.f32 0.0, %v2666
        %v2668 = vpop.f32.mrb[0].mxu0
        %2669 = vmatprep.mubr.bf16.mxu0 0
        %2670 = vmatmul.mubr.bf16.gmra.mrb[0].mxu0 %v2512
        %v2671 = vpop.f32.mrb[0].mxu0
        %v2672 = vadd.f32 0.0, %v2671
        %v2673 = vpop.f32.mrb[0].mxu0
        %v2674 = vpop.f32.mrb[0].mxu0
        %v2675 = vadd.f32 0.0, %v2674
        %v2676 = vpop.f32.mrb[0].mxu0
        %2677 = vdwg.mxu0
        %v2678 = vadd.f32 %v2474, %v2552
        %v2679 = vadd.f32 %v2475, %v2555
        %v2680 = vadd.f32 %v2476, %v2560
        %v2681 = vadd.f32 %v2477, %v2563
        %v2682 = vadd.f32 %v2478, %v2568
        %v2683 = vadd.f32 %v2479, %v2571
        %v2684 = vadd.f32 %v2480, %v2576
        %v2685 = vadd.f32 %v2481, %v2579
        %v2686 = vadd.f32 %v2482, %v2584
        %v2687 = vadd.f32 %v2483, %v2587
        %v2688 = vadd.f32 %v2484, %v2592
        %v2689 = vadd.f32 %v2485, %v2595
        %v2690 = vadd.f32 %v2486, %v2600
        %v2691 = vadd.f32 %v2487, %v2603
        %v2692 = vadd.f32 %v2488, %v2608
        %v2693 = vadd.f32 %v2489, %v2611
        %v2694 = vadd.f32 %v2490, %v2616
        %v2695 = vadd.f32 %v2491, %v2619
        %v2696 = vadd.f32 %v2492, %v2624
        %v2697 = vadd.f32 %v2493, %v2627
        %v2698 = vadd.f32 %v2494, %v2632
        %v2699 = vadd.f32 %v2495, %v2635
        %v2700 = vadd.f32 %v2496, %v2640
        %v2701 = vadd.f32 %v2497, %v2643
        %v2702 = vadd.f32 %v2498, %v2648
        %v2703 = vadd.f32 %v2499, %v2651
        %v2704 = vadd.f32 %v2500, %v2656
        %v2705 = vadd.f32 %v2501, %v2659
        %v2706 = vadd.f32 %v2502, %v2664
        %v2707 = vadd.f32 %v2503, %v2667
        %v2708 = vadd.f32 %v2504, %v2672
        %v2709 = vadd.f32 %v2505, %v2675
        %s2710 = scalar_lea.vmem %s1, 16
        %v2711 = vld [vmem:[%s2710] sm:$0x3]
        %v2712 = vunpack.c.l.b16 %v2208
        %v2713 = vunpack.c.l.b16 %v2211
        %v2714 = vpack.c.b16 %v2713, %v2712
        %v2716 = vsel %vm336, %v2714, 0
        %v2719 = vsel %vm385, %v2711, 0
        %2721 = vmatprep.subr.bf16.mxu0 0
        %2722 = vmatpush1.bf16.msra.mxu0 %v2719
        %2723 = vmatprep.subr.bf16.mxu0 0
        %2724 = vmatpush1.bf16.msra.mxu0 0
        %2725 = vmatprep.subr.bf16.mxu0 0
        %2726 = vmatpush1.bf16.msra.mxu0 0
        %2727 = vmatprep.subr.bf16.mxu0 0
        %2728 = vmatpush1.bf16.msra.mxu0 0
        %2729 = vmatprep.subr.bf16.mxu0 0
        %2730 = vmatpush1.bf16.msra.mxu0 0
        %2731 = vmatprep.subr.bf16.mxu0 0
        %2732 = vmatpush1.bf16.msra.mxu0 0
        %2733 = vmatprep.subr.bf16.mxu0 0
        %2734 = vmatpush1.bf16.msra.mxu0 0
        %2735 = vmatprep.subr.bf16.mxu0 0
        %2736 = vmatpush1.bf16.msra.mxu0 0
        %2737 = vmatprep.subr.bf16.mxu0 0
        %2738 = vmatpush1.bf16.msra.mxu0 0
        %2739 = vmatprep.subr.bf16.mxu0 0
        %2740 = vmatpush1.bf16.msra.mxu0 0
        %2741 = vmatprep.subr.bf16.mxu0 0
        %2742 = vmatpush1.bf16.msra.mxu0 0
        %2743 = vmatprep.subr.bf16.mxu0 0
        %2744 = vmatpush1.bf16.msra.mxu0 0
        %2745 = vmatprep.subr.bf16.mxu0 0
        %2746 = vmatpush1.bf16.msra.mxu0 0
        %2747 = vmatprep.subr.bf16.mxu0 0
        %2748 = vmatpush1.bf16.msra.mxu0 0
        %2749 = vmatprep.subr.bf16.mxu0 0
        %2750 = vmatpush1.bf16.msra.mxu0 0
        %2751 = vmatprep.subr.bf16.mxu0 0
        %2752 = vmatpush1.bf16.msra.mxu0 0
        %2753 = vmatprep.mubr.bf16.mxu0 0
        %2754 = vmatmul.mubr.bf16.gmra.mrb[0].mxu0 %v2269
        %v2755 = vpop.f32.mrb[0].mxu0
        %v2756 = vadd.f32 0.0, %v2755
        %v2757 = vpop.f32.mrb[0].mxu0
        %v2758 = vpop.f32.mrb[0].mxu0
        %v2759 = vadd.f32 0.0, %v2758
        %v2760 = vpop.f32.mrb[0].mxu0
        %2761 = vmatprep.mubr.bf16.mxu0 0
        %2762 = vmatmul.mubr.bf16.gmra.mrb[0].mxu0 %v2272
        %v2763 = vpop.f32.mrb[0].mxu0
        %v2764 = vadd.f32 0.0, %v2763
        %v2765 = vpop.f32.mrb[0].mxu0
        %v2766 = vpop.f32.mrb[0].mxu0
        %v2767 = vadd.f32 0.0, %v2766
        %v2768 = vpop.f32.mrb[0].mxu0
        %2769 = vmatprep.mubr.bf16.mxu0 0
        %2770 = vmatmul.mubr.bf16.gmra.mrb[0].mxu0 %v2275
        %v2771 = vpop.f32.mrb[0].mxu0
        %v2772 = vadd.f32 0.0, %v2771
        %v2773 = vpop.f32.mrb[0].mxu0
        %v2774 = vpop.f32.mrb[0].mxu0
        %v2775 = vadd.f32 0.0, %v2774
        %v2776 = vpop.f32.mrb[0].mxu0
        %2777 = vmatprep.mubr.bf16.mxu0 0
        %2778 = vmatmul.mubr.bf16.gmra.mrb[0].mxu0 %v2278
        %v2779 = vpop.f32.mrb[0].mxu0
        %v2780 = vadd.f32 0.0, %v2779
        %v2781 = vpop.f32.mrb[0].mxu0
        %v2782 = vpop.f32.mrb[0].mxu0
        %v2783 = vadd.f32 0.0, %v2782
        %v2784 = vpop.f32.mrb[0].mxu0
        %2785 = vmatprep.mubr.bf16.mxu0 0
        %2786 = vmatmul.mubr.bf16.gmra.mrb[0].mxu0 %v2281
        %v2787 = vpop.f32.mrb[0].mxu0
        %v2788 = vadd.f32 0.0, %v2787
        %v2789 = vpop.f32.mrb[0].mxu0
        %v2790 = vpop.f32.mrb[0].mxu0
        %v2791 = vadd.f32 0.0, %v2790
        %v2792 = vpop.f32.mrb[0].mxu0
        %2793 = vmatprep.mubr.bf16.mxu0 0
        %2794 = vmatmul.mubr.bf16.gmra.mrb[0].mxu0 %v2284
        %v2795 = vpop.f32.mrb[0].mxu0
        %v2796 = vadd.f32 0.0, %v2795
        %v2797 = vpop.f32.mrb[0].mxu0
        %v2798 = vpop.f32.mrb[0].mxu0
        %v2799 = vadd.f32 0.0, %v2798
        %v2800 = vpop.f32.mrb[0].mxu0
        %2801 = vmatprep.mubr.bf16.mxu0 0
        %2802 = vmatmul.mubr.bf16.gmra.mrb[0].mxu0 %v2287
        %v2803 = vpop.f32.mrb[0].mxu0
        %v2804 = vadd.f32 0.0, %v2803
        %v2805 = vpop.f32.mrb[0].mxu0
        %v2806 = vpop.f32.mrb[0].mxu0
        %v2807 = vadd.f32 0.0, %v2806
        %v2808 = vpop.f32.mrb[0].mxu0
        %2809 = vmatprep.mubr.bf16.mxu0 0
        %2810 = vmatmul.mubr.bf16.gmra.mrb[0].mxu0 %v2290
        %v2811 = vpop.f32.mrb[0].mxu0
        %v2812 = vadd.f32 0.0, %v2811
        %v2813 = vpop.f32.mrb[0].mxu0
        %v2814 = vpop.f32.mrb[0].mxu0
        %v2815 = vadd.f32 0.0, %v2814
        %v2816 = vpop.f32.mrb[0].mxu0
        %2817 = vmatprep.mubr.bf16.mxu0 0
        %2818 = vmatmul.mubr.bf16.gmra.mrb[0].mxu0 %v2293
        %v2819 = vpop.f32.mrb[0].mxu0
        %v2820 = vadd.f32 0.0, %v2819
        %v2821 = vpop.f32.mrb[0].mxu0
        %v2822 = vpop.f32.mrb[0].mxu0
        %v2823 = vadd.f32 0.0, %v2822
        %v2824 = vpop.f32.mrb[0].mxu0
        %2825 = vmatprep.mubr.bf16.mxu0 0
        %2826 = vmatmul.mubr.bf16.gmra.mrb[0].mxu0 %v2296
        %v2827 = vpop.f32.mrb[0].mxu0
        %v2828 = vadd.f32 0.0, %v2827
        %v2829 = vpop.f32.mrb[0].mxu0
        %v2830 = vpop.f32.mrb[0].mxu0
        %v2831 = vadd.f32 0.0, %v2830
        %v2832 = vpop.f32.mrb[0].mxu0
        %2833 = vmatprep.mubr.bf16.mxu0 0
        %2834 = vmatmul.mubr.bf16.gmra.mrb[0].mxu0 %v2299
        %v2835 = vpop.f32.mrb[0].mxu0
        %v2836 = vadd.f32 0.0, %v2835
        %v2837 = vpop.f32.mrb[0].mxu0
        %v2838 = vpop.f32.mrb[0].mxu0
        %v2839 = vadd.f32 0.0, %v2838
        %v2840 = vpop.f32.mrb[0].mxu0
        %2841 = vmatprep.mubr.bf16.mxu0 0
        %2842 = vmatmul.mubr.bf16.gmra.mrb[0].mxu0 %v2302
        %v2843 = vpop.f32.mrb[0].mxu0
        %v2844 = vadd.f32 0.0, %v2843
        %v2845 = vpop.f32.mrb[0].mxu0
        %v2846 = vpop.f32.mrb[0].mxu0
        %v2847 = vadd.f32 0.0, %v2846
        %v2848 = vpop.f32.mrb[0].mxu0
        %2849 = vmatprep.mubr.bf16.mxu0 0
        %2850 = vmatmul.mubr.bf16.gmra.mrb[0].mxu0 %v2305
        %v2851 = vpop.f32.mrb[0].mxu0
        %v2852 = vadd.f32 0.0, %v2851
        %v2853 = vpop.f32.mrb[0].mxu0
        %v2854 = vpop.f32.mrb[0].mxu0
        %v2855 = vadd.f32 0.0, %v2854
        %v2856 = vpop.f32.mrb[0].mxu0
        %2857 = vmatprep.mubr.bf16.mxu0 0
        %2858 = vmatmul.mubr.bf16.gmra.mrb[0].mxu0 %v2308
        %v2859 = vpop.f32.mrb[0].mxu0
        %v2860 = vadd.f32 0.0, %v2859
        %v2861 = vpop.f32.mrb[0].mxu0
        %v2862 = vpop.f32.mrb[0].mxu0
        %v2863 = vadd.f32 0.0, %v2862
        %v2864 = vpop.f32.mrb[0].mxu0
        %2865 = vmatprep.mubr.bf16.mxu0 0
        %2866 = vmatmul.mubr.bf16.gmra.mrb[0].mxu0 %v2512
        %v2867 = vpop.f32.mrb[0].mxu0
        %v2868 = vadd.f32 0.0, %v2867
        %v2869 = vpop.f32.mrb[0].mxu0
        %v2870 = vpop.f32.mrb[0].mxu0
        %v2871 = vadd.f32 0.0, %v2870
        %v2872 = vpop.f32.mrb[0].mxu0
        %2873 = vmatprep.mubr.bf16.mxu0 0
        %2874 = vmatmul.mubr.bf16.gmra.mrb[0].mxu0 %v2716
        %v2875 = vpop.f32.mrb[0].mxu0
        %v2876 = vadd.f32 0.0, %v2875
        %v2877 = vpop.f32.mrb[0].mxu0
        %v2878 = vpop.f32.mrb[0].mxu0
        %v2879 = vadd.f32 0.0, %v2878
        %v2880 = vpop.f32.mrb[0].mxu0
        %2881 = vdwg.mxu0
        %v2882 = vadd.f32 %v2678, %v2756
        %v2883 = vadd.f32 %v2679, %v2759
        %v2884 = vadd.f32 %v2680, %v2764
        %v2885 = vadd.f32 %v2681, %v2767
        %v2886 = vadd.f32 %v2682, %v2772
        %v2887 = vadd.f32 %v2683, %v2775
        %v2888 = vadd.f32 %v2684, %v2780
        %v2889 = vadd.f32 %v2685, %v2783
        %v2890 = vadd.f32 %v2686, %v2788
        %v2891 = vadd.f32 %v2687, %v2791
        %v2892 = vadd.f32 %v2688, %v2796
        %v2893 = vadd.f32 %v2689, %v2799
        %v2894 = vadd.f32 %v2690, %v2804
        %v2895 = vadd.f32 %v2691, %v2807
        %v2896 = vadd.f32 %v2692, %v2812
        %v2897 = vadd.f32 %v2693, %v2815
        %v2898 = vadd.f32 %v2694, %v2820
        %v2899 = vadd.f32 %v2695, %v2823
        %v2900 = vadd.f32 %v2696, %v2828
        %v2901 = vadd.f32 %v2697, %v2831
        %v2902 = vadd.f32 %v2698, %v2836
        %v2903 = vadd.f32 %v2699, %v2839
        %v2904 = vadd.f32 %v2700, %v2844
        %v2905 = vadd.f32 %v2701, %v2847
        %v2906 = vadd.f32 %v2702, %v2852
        %v2907 = vadd.f32 %v2703, %v2855
        %v2908 = vadd.f32 %v2704, %v2860
        %v2909 = vadd.f32 %v2705, %v2863
        %v2910 = vadd.f32 %v2706, %v2868
        %v2911 = vadd.f32 %v2707, %v2871
        %v2912 = vadd.f32 %v2708, %v2876
        %v2913 = vadd.f32 %v2709, %v2879
        %v2914 = vadd.f32 %v2882, %v2883
        %v2915 = vadd.f32 %v2914, %v2884
        %v2916 = vadd.f32 %v2915, %v2885
        %v2917 = vadd.f32 %v2916, %v2886
        %v2918 = vadd.f32 %v2917, %v2887
        %v2919 = vadd.f32 %v2918, %v2888
        %v2920 = vadd.f32 %v2919, %v2889
        %v2921 = vadd.f32 %v2920, %v2890
        %v2922 = vadd.f32 %v2921, %v2891
        %v2923 = vadd.f32 %v2922, %v2892
        %v2924 = vadd.f32 %v2923, %v2893
        %v2925 = vadd.f32 %v2924, %v2894
        %v2926 = vadd.f32 %v2925, %v2895
        %v2927 = vadd.f32 %v2926, %v2896
        %v2928 = vadd.f32 %v2927, %v2897
        %v2929 = vadd.f32 %v2928, %v2898
        %v2930 = vadd.f32 %v2929, %v2899
        %v2931 = vadd.f32 %v2930, %v2900
        %v2932 = vadd.f32 %v2931, %v2901
        %v2933 = vadd.f32 %v2932, %v2902
        %v2934 = vadd.f32 %v2933, %v2903
        %v2935 = vadd.f32 %v2934, %v2904
        %v2936 = vadd.f32 %v2935, %v2905
        %v2937 = vadd.f32 %v2936, %v2906
        %v2938 = vadd.f32 %v2937, %v2907
        %v2939 = vadd.f32 %v2938, %v2908
        %v2940 = vadd.f32 %v2939, %v2909
        %v2941 = vadd.f32 %v2940, %v2910
        %v2942 = vadd.f32 %v2941, %v2911
        %v2943 = vadd.f32 %v2942, %v2912
        %v2944 = vadd.f32 %v2943, %v2913
        %v2945 = vrot.slane %v2944, 4
        %v2946 = vadd.f32 %v2944, %v2945
        %v2947 = vrot.slane %v2946, 2
        %v2948 = vadd.f32 %v2946, %v2947
        %v2949 = vrot.slane %v2948, 1
        %v2950 = vadd.f32 %v2948, %v2949
        %2951 = vst [vmem:[%s182] sm:$0x1] %v2950
        %v2952 = vmul.f32 %v2882, %v2882
        %v2953 = vmul.f32 %v2883, %v2883
        %v2954 = vmul.f32 %v2884, %v2884
        %v2955 = vmul.f32 %v2885, %v2885
        %v2956 = vmul.f32 %v2886, %v2886
        %v2957 = vmul.f32 %v2887, %v2887
        %v2958 = vmul.f32 %v2888, %v2888
        %v2959 = vmul.f32 %v2889, %v2889
        %v2960 = vmul.f32 %v2890, %v2890
        %v2961 = vmul.f32 %v2891, %v2891
        %v2962 = vmul.f32 %v2892, %v2892
        %v2963 = vmul.f32 %v2893, %v2893
        %v2964 = vmul.f32 %v2894, %v2894
        %v2965 = vmul.f32 %v2895, %v2895
        %v2966 = vmul.f32 %v2896, %v2896
        %v2967 = vmul.f32 %v2897, %v2897
        %v2968 = vmul.f32 %v2898, %v2898
        %v2969 = vmul.f32 %v2899, %v2899
        %v2970 = vmul.f32 %v2900, %v2900
        %v2971 = vmul.f32 %v2901, %v2901
        %v2972 = vmul.f32 %v2902, %v2902
        %v2973 = vmul.f32 %v2903, %v2903
        %v2974 = vmul.f32 %v2904, %v2904
        %v2975 = vmul.f32 %v2905, %v2905
        %v2976 = vmul.f32 %v2906, %v2906
        %v2977 = vmul.f32 %v2907, %v2907
        %v2978 = vmul.f32 %v2908, %v2908
        %v2979 = vmul.f32 %v2909, %v2909
        %v2980 = vmul.f32 %v2910, %v2910
        %v2981 = vmul.f32 %v2911, %v2911
        %v2982 = vmul.f32 %v2912, %v2912
        %v2983 = vmul.f32 %v2913, %v2913
        %v2984 = vadd.f32 %v2952, %v2953
        %v2985 = vadd.f32 %v2984, %v2954
        %v2986 = vadd.f32 %v2985, %v2955
        %v2987 = vadd.f32 %v2986, %v2956
        %v2988 = vadd.f32 %v2987, %v2957
        %v2989 = vadd.f32 %v2988, %v2958
        %v2990 = vadd.f32 %v2989, %v2959
        %v2991 = vadd.f32 %v2990, %v2960
        %v2992 = vadd.f32 %v2991, %v2961
        %v2993 = vadd.f32 %v2992, %v2962
        %v2994 = vadd.f32 %v2993, %v2963
        %v2995 = vadd.f32 %v2994, %v2964
        %v2996 = vadd.f32 %v2995, %v2965
        %v2997 = vadd.f32 %v2996, %v2966
        %v2998 = vadd.f32 %v2997, %v2967
        %v2999 = vadd.f32 %v2998, %v2968
        %v3000 = vadd.f32 %v2999, %v2969
        %v3001 = vadd.f32 %v3000, %v2970
        %v3002 = vadd.f32 %v3001, %v2971
        %v3003 = vadd.f32 %v3002, %v2972
        %v3004 = vadd.f32 %v3003, %v2973
        %v3005 = vadd.f32 %v3004, %v2974
        %v3006 = vadd.f32 %v3005, %v2975
        %v3007 = vadd.f32 %v3006, %v2976
        %v3008 = vadd.f32 %v3007, %v2977
        %v3009 = vadd.f32 %v3008, %v2978
        %v3010 = vadd.f32 %v3009, %v2979
        %v3011 = vadd.f32 %v3010, %v2980
        %v3012 = vadd.f32 %v3011, %v2981
        %v3013 = vadd.f32 %v3012, %v2982
        %v3014 = vadd.f32 %v3013, %v2983
        %v3015 = vrot.slane %v3014, 4
        %v3016 = vadd.f32 %v3014, %v3015
        %v3017 = vrot.slane %v3016, 2
        %v3018 = vadd.f32 %v3016, %v3017
        %v3019 = vrot.slane %v3018, 1
        %v3020 = vadd.f32 %v3018, %v3019
        %3021 = vst [vmem:[%s188] sm:$0x1] %v3020
        %s3022 = sand.u32 %s90, 1
        %s3023 = scalar_lea.sflag [#allocation3], %s3022
        %s3024 = sand.u32 %s90, 1
        %s3025 = scalar_lea.vmem [#allocation2], %s3024
        %s3026 = sand.u32 %s118, 1
        %s3027 = scalar_lea.sflag [#allocation5], %s3026
        %s3028 = sand.u32 %s118, 1
        %s3029 = scalar_lea.vmem [#allocation4], %s3028
        // Predicated region
        $region29: #{tpu_custom_call.1} parent=27 // pred_check
          %p3030 = pneg %p100
        $region30: #{tpu_custom_call.1} parent=27 // pred_check_branch
          %3032 = sbr.rel (%p3030) target = $region32
        $region31: #{tpu_custom_call.1} parent=27 // pred_region
          %s3034 = ssub.s32 16, 16
          %3035 = vsyncadd %s3023, %s3034
          %s3036 = sadd.s32 %s26, %s25
          %s3037 = smul.addr %s3036, 16
          %s3038 = scalar_lea.hbm %s2, %s3037
          %s3040 = sshll.u32 %s3025, 4
          %s3041 = int_to_ptr.vmem [resolvable:$true] %s3040
          %3043 = dma.vmem_to_hbm [thread:$0]  %s3041, 16, %s3038, %s3023
        $region32: #{tpu_custom_call.1} parent=27 // pred_fallthru
          _
        // Predicated region
        $region33: #{tpu_custom_call.1} parent=27 // pred_check
          %p3044 = pneg %p128
        $region34: #{tpu_custom_call.1} parent=27 // pred_check_branch
          %3046 = sbr.rel (%p3044) target = $region36
        $region35: #{tpu_custom_call.1} parent=27 // pred_region
          %s3048 = ssub.s32 16, 16
          %3049 = vsyncadd %s3027, %s3048
          %s3050 = sadd.s32 %s26, %s25
          %s3051 = smul.addr %s3050, 16
          %s3052 = scalar_lea.hbm %s3, %s3051
          %s3054 = sshll.u32 %s3029, 4
          %s3055 = int_to_ptr.vmem [resolvable:$true] %s3054
          %3057 = dma.vmem_to_hbm [thread:$0]  %s3055, 16, %s3052, %s3027
        $region36: #{tpu_custom_call.1} parent=27 // pred_fallthru
          _
      $region28: #{tpu_custom_call.1} parent=5 // pred_fallthru
        _
      %p3058 = scmp.le.s32.totalorder 2, %s16
      // Predicated region
      $region37: #{tpu_custom_call.1} parent=5 // pred_check
        %p3059 = pneg %p3058
      $region38: #{tpu_custom_call.1} parent=5 // pred_check_branch
        %3061 = sbr.rel (%p3059) target = $region40
      $region39: #{tpu_custom_call.1} parent=5 // pred_region
        %s3062 = ssub.s32 %s16, 2
        // Predicated region
        $region41: #{tpu_custom_call.1} parent=39 // pred_check
          %p3063 = pneg %p106
        $region42: #{tpu_custom_call.1} parent=39 // pred_check_branch
          %3065 = sbr.rel (%p3063) target = $region44
        $region43: #{tpu_custom_call.1} parent=39 // pred_region
          %s3066 = sand.u32 %s91, 1
          %s3067 = scalar_lea.sflag [#allocation3], %s3066
          %s3068 = sand.u32 %s91, 1
          %s3069 = scalar_lea.vmem [#allocation2], %s3068
          %3070 = dma.done %s3067, 16
        $region44: #{tpu_custom_call.1} parent=39 // pred_fallthru
          _
        // Predicated region
        $region45: #{tpu_custom_call.1} parent=39 // pred_check
          %p3071 = pneg %p134
        $region46: #{tpu_custom_call.1} parent=39 // pred_check_branch
          %3073 = sbr.rel (%p3071) target = $region48
        $region47: #{tpu_custom_call.1} parent=39 // pred_region
          %s3074 = sand.u32 %s119, 1
          %s3075 = scalar_lea.sflag [#allocation5], %s3074
          %s3076 = sand.u32 %s119, 1
          %s3077 = scalar_lea.vmem [#allocation4], %s3076
          %3078 = dma.done %s3075, 16
        $region48: #{tpu_custom_call.1} parent=39 // pred_fallthru
          _
      $region40: #{tpu_custom_call.1} parent=5 // pred_fallthru
        _
    $region6: #{tpu_custom_call.1} parent=1 // loop_footer
      %s20 = sadd.s32 1, %s16
    $region7: #{tpu_custom_call.1} parent=1 // loop_footer_branch
      %15 = sbr.rel target = $region3
    $region8: #{tpu_custom_call.1} parent=1 // loop_exit
      _
    %3079 = vsyncpa [#allocation3], 1
    %s3080 = scalar_lea.sflag [#allocation3], 1
    %3081 = vsyncpa %s3080, 1
    %3082 = vsyncpa [#allocation5], 1
    %s3083 = scalar_lea.sflag [#allocation5], 1
    %3084 = vsyncpa %s3083, 1

</llo_original>
